<compile_context>
chip_gen: v5e
topology: v5e:2x2
jax: 0.10.0
libtpu: 0.0.40
codegen_flags: <defaults>
</compile_context>

<pallas_src>
import math
from functools import partial

import jax
import jax.numpy as jnp
from jax.experimental import pallas as pl
from jax.experimental.pallas import tpu as pltpu


# ----------------------------- Pallas kernel --------------------------------
def encoder_block_kernel(
    x_ref, bias_ref,
    wq_ref, bq_ref, wk_ref, bk_ref, wv_ref, bv_ref, wo_ref, bo_ref,
    g1_ref, be1_ref, w1_ref, bf1_ref, w2_ref, bf2_ref, g2_ref, be2_ref,
    out_ref, score_ref=None,
    *, n_heads, head_dim, eps=1e-5,
):
    # One grid step == one batch element.  QKV/attention/FFN/LayerNorms fused.
    S, D = x_ref.shape
    x = x_ref[...]                                    # (S, D) f32
    x_bf = x.astype(jnp.bfloat16)
    mask_bias = bias_ref[...]                         # (1, S) f32 additive bias

    # QKV projections: bf16 MXU inputs, f32 accumulation.
    q = jnp.dot(x_bf, wq_ref[...], preferred_element_type=jnp.float32) + bq_ref[...]
    k = jnp.dot(x_bf, wk_ref[...], preferred_element_type=jnp.float32) + bk_ref[...]
    v = jnp.dot(x_bf, wv_ref[...], preferred_element_type=jnp.float32) + bv_ref[...]

    scale = 1.0 / math.sqrt(head_dim)
    # head-major layout; transposes done once in f32, then cast for the MXU
    qh = (q * scale).reshape(S, n_heads, head_dim).swapaxes(0, 1)   # (H, S, hd)
    kh = k.reshape(S, n_heads, head_dim).swapaxes(0, 1)             # (H, S, hd)
    vh = v.reshape(S, n_heads, head_dim).swapaxes(0, 1)             # (H, S, hd)

    # attention logits for all heads in one batched matmul
    s = jnp.einsum("hqd,hkd->hqk", qh.astype(jnp.bfloat16), kh.astype(jnp.bfloat16),
                   preferred_element_type=jnp.float32)              # (H, S, S)
    s = s + mask_bias[None, :, :]                                   # key-padding mask

    # numerically-stable softmax in f32; reciprocal goes to the EUP slot
    s = s - jnp.max(s, axis=-1, keepdims=True)
    p = jnp.exp(s)
    p = p * pl.reciprocal(jnp.sum(p, axis=-1, keepdims=True), approx=True)

    if score_ref is not None:                 # only emitted for the last layer
        score_ref[...] = p.astype(score_ref.dtype)

    ctx = jnp.einsum("hqk,hkd->hqd", p.astype(jnp.bfloat16), vh.astype(jnp.bfloat16),
                     preferred_element_type=jnp.float32)            # (H, S, hd)
    ctx = ctx.swapaxes(0, 1).reshape(S, D)                          # (S, D) f32

    attn = jnp.dot(ctx.astype(jnp.bfloat16), wo_ref[...],
                   preferred_element_type=jnp.float32) + bo_ref[...]

    # residual + LayerNorm 1 (f32)
    h1 = x + attn
    mu = jnp.mean(h1, axis=-1, keepdims=True)
    var = jnp.mean((h1 - mu) ** 2, axis=-1, keepdims=True)
    h1 = (h1 - mu) * jax.lax.rsqrt(var + eps) * g1_ref[...] + be1_ref[...]

    # position-wise FFN (Linear -> ReLU -> Linear), bf16 MXU inputs
    f = jnp.dot(h1.astype(jnp.bfloat16), w1_ref[...],
                preferred_element_type=jnp.float32) + bf1_ref[...]
    f = jnp.maximum(f, 0.0)
    f = jnp.dot(f.astype(jnp.bfloat16), w2_ref[...],
                preferred_element_type=jnp.float32) + bf2_ref[...]

    # residual + LayerNorm 2 (f32)
    h2 = h1 + f
    mu2 = jnp.mean(h2, axis=-1, keepdims=True)
    var2 = jnp.mean((h2 - mu2) ** 2, axis=-1, keepdims=True)
    h2 = (h2 - mu2) * jax.lax.rsqrt(var2 + eps) * g2_ref[...] + be2_ref[...]

    out_ref[...] = h2.astype(out_ref.dtype)


# ----------------------------- wrapper ---------------------------------------
def _vmem_limit_bytes(S, D, F, H, want_score):
    # explicit VMEM budget (important on v7x's 64 MiB): weights (bf16) + biases +
    # per-step I/O blocks, x2 for double buffering, + live f32 intermediates + margin
    w = 2 * (4 * D * D + 2 * D * F)
    small = 4 * (6 * D + F + 4 * D)
    io = 4 * (2 * S * D + S) + (4 * H * S * S if want_score else 0)
    live = 4 * (6 * S * D + 2 * H * S * S + S * F)
    return int(min(2 * (w + small + io) + live + (8 << 20), 120 << 20))


def encoder_block(x, mask_bias, p, n_heads, want_score):
    B, S, D = x.shape
    F = p["w1"].shape[1]
    H = n_heads
    head_dim = D // H

    def full(shape):
        return pl.BlockSpec(shape, lambda b, _n=len(shape): (0,) * _n)

    in_specs = [
        pl.BlockSpec((None, S, D), lambda b: (b, 0, 0)),   # x (per-batch block)
        pl.BlockSpec((None, 1, S), lambda b: (b, 0, 0)),   # additive mask bias
        full((D, D)), full((1, D)),                        # wq, bq
        full((D, D)), full((1, D)),                        # wk, bk
        full((D, D)), full((1, D)),                        # wv, bv
        full((D, D)), full((1, D)),                        # wo, bo
        full((1, D)), full((1, D)),                        # ln1 gamma, beta
        full((D, F)), full((1, F)),                        # ffn w1, b1
        full((F, D)), full((1, D)),                        # ffn w2, b2
        full((1, D)), full((1, D)),                        # ln2 gamma, beta
    ]
    out_specs = [pl.BlockSpec((None, S, D), lambda b: (b, 0, 0))]
    out_shape = [jax.ShapeDtypeStruct((B, S, D), jnp.float32)]
    if want_score:
        out_specs.append(pl.BlockSpec((None, H, S, S), lambda b: (b, 0, 0, 0)))
        out_shape.append(jax.ShapeDtypeStruct((B, H, S, S), jnp.float32))

    flops = 2 * B * S * (4 * D * D + 2 * S * D + 2 * D * F)
    transcendentals = B * (H * S * S + H * S + 4 * S)
    bytes_accessed = (
        2 * (4 * D * D + 2 * D * F)                  # bf16 weights
        + 4 * (6 * D + F + 4 * D)                    # f32 biases + LN params
        + 4 * B * S * (2 * D + 1)                    # x in, out, mask bias
        + (4 * B * H * S * S if want_score else 0)   # last-layer score writeback
    )

    fn = pl.pallas_call(
        partial(encoder_block_kernel, n_heads=H, head_dim=head_dim),
        out_shape=out_shape,
        grid_spec=pltpu.PrefetchScalarGridSpec(
            num_scalar_prefetch=0, grid=(B,),
            in_specs=in_specs, out_specs=out_specs),
        compiler_params=pltpu.CompilerParams(
            dimension_semantics=("parallel",),       # B axis is fully independent
            vmem_limit_bytes=_vmem_limit_bytes(S, D, F, H, want_score)),
        cost_estimate=pl.CostEstimate(
            flops=flops, transcendentals=transcendentals,
            bytes_accessed=bytes_accessed),
    )
    outs = fn(
        x, mask_bias,
        p["wq"], p["bq"], p["wk"], p["bk"], p["wv"], p["bv"], p["wo"], p["bo"],
        p["ln1_g"], p["ln1_b"], p["w1"], p["b1"], p["w2"], p["b2"],
        p["ln2_g"], p["ln2_b"],
    )
    if want_score:
        return outs[0], outs[1]
    return outs[0], None


def sinusoidal_pe(max_len, d):
    pos = jnp.arange(max_len, dtype=jnp.float32)[:, None]
    i = jnp.arange(0, d, 2, dtype=jnp.float32)
    div = jnp.exp(-jnp.log(10000.0) * i / d)
    pe = jnp.zeros((max_len, d), jnp.float32)
    pe = pe.at[:, 0::2].set(jnp.sin(pos * div))
    pe = pe.at[:, 1::2].set(jnp.cos(pos * div))
    return pe


def encoder_forward(src_tokens, src_mask, params, n_heads):
    # glue in plain JAX: embedding gather + positional encoding (cheap XLA ops)
    x = params["embedding"][src_tokens]                         # (B, S, D)
    x = x + params["pe"][: src_tokens.shape[1]][None, :, :]
    # dropout = identity (eval mode)
    B, S = src_tokens.shape
    # additive key-padding bias computed once on the host side
    mask_bias = jnp.where(src_mask > 0, 0.0, -1e9).astype(jnp.float32).reshape(B, 1, S)

    n_layers = len(params["layers"])
    score = None
    for i, layer_p in enumerate(params["layers"]):
        x, s = encoder_block(x, mask_bias, layer_p, n_heads,
                             want_score=(i == n_layers - 1))
        if s is not None:
            score = s
    return x, score


# ------------------------- deterministic parameter init ----------------------
def init_params(key, n_layers, vocab, max_len, hidden, ff):
    def nrm(k, shape, s=0.05, dtype=jnp.float32):
        return (s * jax.random.normal(k, shape)).astype(dtype)

    keys = jax.random.split(key, 1 + n_layers)
    params = {
        "embedding": nrm(keys[0], (vocab, hidden), 1.0),
        "pe": sinusoidal_pe(max_len, hidden),
        "layers": [],
    }
    bf16 = jnp.bfloat16
    for li in range(n_layers):
        lk = jax.random.split(keys[1 + li], 12)
        layer = {
            # weight matrices stored in HBM as bf16 (MXU inputs); biases / LN in f32
            "wq": nrm(lk[0], (hidden, hidden), dtype=bf16), "bq": nrm(lk[1], (1, hidden)),
            "wk": nrm(lk[2], (hidden, hidden), dtype=bf16), "bk": nrm(lk[3], (1, hidden)),
            "wv": nrm(lk[4], (hidden, hidden), dtype=bf16), "bv": nrm(lk[5], (1, hidden)),
            "wo": nrm(lk[6], (hidden, hidden), dtype=bf16), "bo": nrm(lk[7], (1, hidden)),
            "ln1_g": jnp.ones((1, hidden), jnp.float32),
            "ln1_b": jnp.zeros((1, hidden), jnp.float32),
            "w1": nrm(lk[8], (hidden, ff), dtype=bf16), "b1": nrm(lk[9], (1, ff)),
            "w2": nrm(lk[10], (ff, hidden), dtype=bf16), "b2": nrm(lk[11], (1, hidden)),
            "ln2_g": jnp.ones((1, hidden), jnp.float32),
            "ln2_b": jnp.zeros((1, hidden), jnp.float32),
        }
        params["layers"].append(layer)
    return params


# ----------------------------- pure-JAX reference ----------------------------
def ref_block(x, mask, p, n_heads, eps=1e-5):
    B, S, D = x.shape
    hd = D // n_heads
    # bf16 weights are upcast to f32 by promotion; reference math stays f32
    q = x @ p["wq"] + p["bq"]
    k = x @ p["wk"] + p["bk"]
    v = x @ p["wv"] + p["bv"]
    q = q.reshape(B, S, n_heads, hd).transpose(0, 2, 1, 3)
    k = k.reshape(B, S, n_heads, hd).transpose(0, 2, 1, 3)
    v = v.reshape(B, S, n_heads, hd).transpose(0, 2, 1, 3)
    s = jnp.einsum("bhqd,bhkd->bhqk", q, k) / math.sqrt(hd)
    s = jnp.where(mask[:, None, None, :] > 0, s, -1e9)
    score = jax.nn.softmax(s, axis=-1)
    ctx = jnp.einsum("bhqk,bhkd->bhqd", score, v).transpose(0, 2, 1, 3).reshape(B, S, D)
    attn = ctx @ p["wo"] + p["bo"]
    h1 = x + attn
    h1 = (h1 - h1.mean(-1, keepdims=True)) / jnp.sqrt(h1.var(-1, keepdims=True) + eps)
    h1 = h1 * p["ln1_g"] + p["ln1_b"]
    f = jnp.maximum(h1 @ p["w1"] + p["b1"], 0.0) @ p["w2"] + p["b2"]
    h2 = h1 + f
    h2 = (h2 - h2.mean(-1, keepdims=True)) / jnp.sqrt(h2.var(-1, keepdims=True) + eps)
    h2 = h2 * p["ln2_g"] + p["ln2_b"]
    return h2, score


def ref_forward(src_tokens, src_mask, params, n_heads):
    x = params["embedding"][src_tokens] + params["pe"][: src_tokens.shape[1]][None]
    score = None
    for lp in params["layers"]:
        x, score = ref_block(x, src_mask.astype(jnp.float32), lp, n_heads)
    return x, score


# ----------------------------- main ------------------------------------------
if __name__ == "__main__":
    B, S = 2, 8
    hidden, ff, n_heads, n_layers = 32, 64, 4, 2
    vocab, max_len = 50, 16

    key = jax.random.PRNGKey(0)
    kp, kt = jax.random.split(key)
    params = init_params(kp, n_layers, vocab, max_len, hidden, ff)

    src = jax.random.randint(kt, (B, S), 0, vocab, dtype=jnp.int32)
    lengths = jnp.array([S, 5], dtype=jnp.int32)
    src_mask = (jnp.arange(S)[None, :] < lengths[:, None]).astype(jnp.int32)   # (B, S)

    out, score = encoder_forward(src, src_mask, params, n_heads)
    out, score = jax.block_until_ready((out, score))

    ref_out, ref_score = ref_forward(src, src_mask, params, n_heads)
    assert out.shape == (B, S, hidden) and score.shape == (B, n_heads, S, S)
    # bf16 MXU inputs in the kernel vs f32 reference -> loosened tolerances
    assert jnp.allclose(out, ref_out, atol=3e-2, rtol=3e-2)
    assert jnp.allclose(score, ref_score, atol=1e-2, rtol=1e-2)

    print("KERNEL_OK")
</pallas_src>

<mosaic_0001>
module attributes {stable_mosaic.version = 11 : i64} {
  func.func @encoder_block_kernel(%arg0: i32, %arg1: memref<1x8x32xf32, #tpu.memory_space<vmem>>, %arg2: memref<1x1x8xf32, #tpu.memory_space<vmem>>, %arg3: memref<32x32xbf16, #tpu.memory_space<vmem>>, %arg4: memref<1x32xf32, #tpu.memory_space<vmem>>, %arg5: memref<32x32xbf16, #tpu.memory_space<vmem>>, %arg6: memref<1x32xf32, #tpu.memory_space<vmem>>, %arg7: memref<32x32xbf16, #tpu.memory_space<vmem>>, %arg8: memref<1x32xf32, #tpu.memory_space<vmem>>, %arg9: memref<32x32xbf16, #tpu.memory_space<vmem>>, %arg10: memref<1x32xf32, #tpu.memory_space<vmem>>, %arg11: memref<1x32xf32, #tpu.memory_space<vmem>>, %arg12: memref<1x32xf32, #tpu.memory_space<vmem>>, %arg13: memref<32x64xbf16, #tpu.memory_space<vmem>>, %arg14: memref<1x64xf32, #tpu.memory_space<vmem>>, %arg15: memref<64x32xbf16, #tpu.memory_space<vmem>>, %arg16: memref<1x32xf32, #tpu.memory_space<vmem>>, %arg17: memref<1x32xf32, #tpu.memory_space<vmem>>, %arg18: memref<1x32xf32, #tpu.memory_space<vmem>>, %arg19: memref<1x8x32xf32, #tpu.memory_space<vmem>>) attributes {dimension_semantics = [#tpu.dimension_semantics<parallel>], iteration_bounds = array<i64: 2>, scalar_prefetch = 0 : i64, scratch_operands = 0 : i64, tpu.core_type = #tpu.core_type<tc>, window_params = [{transform_indices = @transform_0, window_bounds = array<i64: 1, 8, 32>}, {transform_indices = @transform_1, window_bounds = array<i64: 1, 1, 8>}, {pipeline_mode = #tpu.pipeline_mode<synchronous>, transform_indices = @transform_2, window_bounds = array<i64: 32, 32>}, {pipeline_mode = #tpu.pipeline_mode<synchronous>, transform_indices = @transform_3, window_bounds = array<i64: 1, 32>}, {pipeline_mode = #tpu.pipeline_mode<synchronous>, transform_indices = @transform_4, window_bounds = array<i64: 32, 32>}, {pipeline_mode = #tpu.pipeline_mode<synchronous>, transform_indices = @transform_5, window_bounds = array<i64: 1, 32>}, {pipeline_mode = #tpu.pipeline_mode<synchronous>, transform_indices = @transform_6, window_bounds = array<i64: 32, 32>}, {pipeline_mode = #tpu.pipeline_mode<synchronous>, transform_indices = @transform_7, window_bounds = array<i64: 1, 32>}, {pipeline_mode = #tpu.pipeline_mode<synchronous>, transform_indices = @transform_8, window_bounds = array<i64: 32, 32>}, {pipeline_mode = #tpu.pipeline_mode<synchronous>, transform_indices = @transform_9, window_bounds = array<i64: 1, 32>}, {pipeline_mode = #tpu.pipeline_mode<synchronous>, transform_indices = @transform_10, window_bounds = array<i64: 1, 32>}, {pipeline_mode = #tpu.pipeline_mode<synchronous>, transform_indices = @transform_11, window_bounds = array<i64: 1, 32>}, {pipeline_mode = #tpu.pipeline_mode<synchronous>, transform_indices = @transform_12, window_bounds = array<i64: 32, 64>}, {pipeline_mode = #tpu.pipeline_mode<synchronous>, transform_indices = @transform_13, window_bounds = array<i64: 1, 64>}, {pipeline_mode = #tpu.pipeline_mode<synchronous>, transform_indices = @transform_14, window_bounds = array<i64: 64, 32>}, {pipeline_mode = #tpu.pipeline_mode<synchronous>, transform_indices = @transform_15, window_bounds = array<i64: 1, 32>}, {pipeline_mode = #tpu.pipeline_mode<synchronous>, transform_indices = @transform_16, window_bounds = array<i64: 1, 32>}, {pipeline_mode = #tpu.pipeline_mode<synchronous>, transform_indices = @transform_17, window_bounds = array<i64: 1, 32>}, {transform_indices = @transform_18, window_bounds = array<i64: 1, 8, 32>}]} {
    %c0 = arith.constant 0 : index
    %c0_0 = arith.constant 0 : index
    %c0_1 = arith.constant 0 : index
    %0 = vector.load %arg1[%c0, %c0_0, %c0_1] : memref<1x8x32xf32, #tpu.memory_space<vmem>>, vector<1x8x32xf32>
    %1 = vector.shape_cast %0 : vector<1x8x32xf32> to vector<8x32xf32>
    %2 = arith.truncf %1 : vector<8x32xf32> to vector<8x32xbf16>
    %c0_2 = arith.constant 0 : index
    %c0_3 = arith.constant 0 : index
    %c0_4 = arith.constant 0 : index
    %3 = vector.load %arg2[%c0_2, %c0_3, %c0_4] : memref<1x1x8xf32, #tpu.memory_space<vmem>>, vector<1x1x8xf32>
    %4 = vector.shape_cast %3 : vector<1x1x8xf32> to vector<1x8xf32>
    %c0_5 = arith.constant 0 : index
    %c0_6 = arith.constant 0 : index
    %5 = vector.load %arg3[%c0_5, %c0_6] : memref<32x32xbf16, #tpu.memory_space<vmem>>, vector<32x32xbf16>
    %cst = arith.constant dense<0.000000e+00> : vector<8x32xf32>
    %6 = tpu.matmul %2, %5, %cst {dimension_numbers = #tpu.dot_dimension_numbers<[1], [0], [0], [1], [0, 0, 1, 1], [], []>} : vector<8x32xbf16>, vector<32x32xbf16>, vector<8x32xf32> -> vector<8x32xf32>
    %c0_7 = arith.constant 0 : index
    %c0_8 = arith.constant 0 : index
    %7 = vector.load %arg4[%c0_7, %c0_8] : memref<1x32xf32, #tpu.memory_space<vmem>>, vector<1x32xf32>
    %8 = vector.broadcast %7 : vector<1x32xf32> to vector<8x32xf32>
    %9 = arith.addf %6, %8 : vector<8x32xf32>
    %c0_9 = arith.constant 0 : index
    %c0_10 = arith.constant 0 : index
    %10 = vector.load %arg5[%c0_9, %c0_10] : memref<32x32xbf16, #tpu.memory_space<vmem>>, vector<32x32xbf16>
    %cst_11 = arith.constant dense<0.000000e+00> : vector<8x32xf32>
    %11 = tpu.matmul %2, %10, %cst_11 {dimension_numbers = #tpu.dot_dimension_numbers<[1], [0], [0], [1], [0, 0, 1, 1], [], []>} : vector<8x32xbf16>, vector<32x32xbf16>, vector<8x32xf32> -> vector<8x32xf32>
    %c0_12 = arith.constant 0 : index
    %c0_13 = arith.constant 0 : index
    %12 = vector.load %arg6[%c0_12, %c0_13] : memref<1x32xf32, #tpu.memory_space<vmem>>, vector<1x32xf32>
    %13 = vector.broadcast %12 : vector<1x32xf32> to vector<8x32xf32>
    %14 = arith.addf %11, %13 : vector<8x32xf32>
    %c0_14 = arith.constant 0 : index
    %c0_15 = arith.constant 0 : index
    %15 = vector.load %arg7[%c0_14, %c0_15] : memref<32x32xbf16, #tpu.memory_space<vmem>>, vector<32x32xbf16>
    %cst_16 = arith.constant dense<0.000000e+00> : vector<8x32xf32>
    %16 = tpu.matmul %2, %15, %cst_16 {dimension_numbers = #tpu.dot_dimension_numbers<[1], [0], [0], [1], [0, 0, 1, 1], [], []>} : vector<8x32xbf16>, vector<32x32xbf16>, vector<8x32xf32> -> vector<8x32xf32>
    %c0_17 = arith.constant 0 : index
    %c0_18 = arith.constant 0 : index
    %17 = vector.load %arg8[%c0_17, %c0_18] : memref<1x32xf32, #tpu.memory_space<vmem>>, vector<1x32xf32>
    %18 = vector.broadcast %17 : vector<1x32xf32> to vector<8x32xf32>
    %19 = arith.addf %16, %18 : vector<8x32xf32>
    %cst_19 = arith.constant 0.353553385 : f32
    %20 = vector.broadcast %cst_19 : f32 to vector<8x32xf32>
    %21 = arith.mulf %9, %20 : vector<8x32xf32>
    %22 = vector.shape_cast %21 : vector<8x32xf32> to vector<8x4x8xf32>
    %23 = tpu.transpose %22, [1, 0, 2] : vector<8x4x8xf32> -> vector<4x8x8xf32>
    %24 = vector.shape_cast %14 : vector<8x32xf32> to vector<8x4x8xf32>
    %25 = tpu.transpose %24, [1, 0, 2] : vector<8x4x8xf32> -> vector<4x8x8xf32>
    %26 = vector.shape_cast %19 : vector<8x32xf32> to vector<8x4x8xf32>
    %27 = tpu.transpose %26, [1, 0, 2] : vector<8x4x8xf32> -> vector<4x8x8xf32>
    %28 = arith.truncf %23 : vector<4x8x8xf32> to vector<4x8x8xbf16>
    %29 = arith.truncf %25 : vector<4x8x8xf32> to vector<4x8x8xbf16>
    "tpu.trace_start"() <{level = 10 : i32, message = "hqd,hkd->hqk"}> : () -> ()
    %cst_20 = arith.constant dense<0.000000e+00> : vector<4x8x8xf32>
    %30 = tpu.matmul %28, %29, %cst_20 {dimension_numbers = #tpu.dot_dimension_numbers<[2], [2], [1], [1], [0, 0, 0, 1, 1, 1], [0], [0]>} : vector<4x8x8xbf16>, vector<4x8x8xbf16>, vector<4x8x8xf32> -> vector<4x8x8xf32>
    "tpu.trace_stop"() : () -> ()
    %31 = vector.shape_cast %4 : vector<1x8xf32> to vector<1x1x8xf32>
    %32 = vector.broadcast %31 : vector<1x1x8xf32> to vector<4x8x8xf32>
    %33 = arith.addf %30, %32 : vector<4x8x8xf32>
    %cst_21 = arith.constant dense<0xFF800000> : vector<4x8xf32>
    %34 = vector.multi_reduction <maximumf>, %33, %cst_21 [2] : vector<4x8x8xf32> to vector<4x8xf32>
    %35 = vector.shape_cast %34 : vector<4x8xf32> to vector<4x8x1xf32>
    %36 = vector.broadcast %35 : vector<4x8x1xf32> to vector<4x8x8xf32>
    %37 = arith.subf %33, %36 : vector<4x8x8xf32>
    %38 = math.exp %37 : vector<4x8x8xf32>
    %cst_22 = arith.constant dense<0.000000e+00> : vector<4x8xf32>
    %39 = vector.multi_reduction <add>, %38, %cst_22 [2] : vector<4x8x8xf32> to vector<4x8xf32>
    %40 = vector.shape_cast %39 : vector<4x8xf32> to vector<4x8x1xf32>
    %41 = tpu.reciprocal %40 {approx = true} : vector<4x8x1xf32> -> vector<4x8x1xf32>
    %42 = vector.broadcast %41 : vector<4x8x1xf32> to vector<4x8x8xf32>
    %43 = arith.mulf %38, %42 : vector<4x8x8xf32>
    %44 = arith.truncf %43 : vector<4x8x8xf32> to vector<4x8x8xbf16>
    %45 = arith.truncf %27 : vector<4x8x8xf32> to vector<4x8x8xbf16>
    "tpu.trace_start"() <{level = 10 : i32, message = "hqk,hkd->hqd"}> : () -> ()
    %cst_23 = arith.constant dense<0.000000e+00> : vector<4x8x8xf32>
    %46 = tpu.matmul %44, %45, %cst_23 {dimension_numbers = #tpu.dot_dimension_numbers<[2], [1], [1], [2], [0, 0, 0, 1, 1, 2], [0], [0]>} : vector<4x8x8xbf16>, vector<4x8x8xbf16>, vector<4x8x8xf32> -> vector<4x8x8xf32>
    "tpu.trace_stop"() : () -> ()
    %47 = tpu.transpose %46, [1, 0, 2] : vector<4x8x8xf32> -> vector<8x4x8xf32>
    %48 = vector.shape_cast %47 : vector<8x4x8xf32> to vector<8x32xf32>
    %49 = arith.truncf %48 : vector<8x32xf32> to vector<8x32xbf16>
    %c0_24 = arith.constant 0 : index
    %c0_25 = arith.constant 0 : index
    %50 = vector.load %arg9[%c0_24, %c0_25] : memref<32x32xbf16, #tpu.memory_space<vmem>>, vector<32x32xbf16>
    %cst_26 = arith.constant dense<0.000000e+00> : vector<8x32xf32>
    %51 = tpu.matmul %49, %50, %cst_26 {dimension_numbers = #tpu.dot_dimension_numbers<[1], [0], [0], [1], [0, 0, 1, 1], [], []>} : vector<8x32xbf16>, vector<32x32xbf16>, vector<8x32xf32> -> vector<8x32xf32>
    %c0_27 = arith.constant 0 : index
    %c0_28 = arith.constant 0 : index
    %52 = vector.load %arg10[%c0_27, %c0_28] : memref<1x32xf32, #tpu.memory_space<vmem>>, vector<1x32xf32>
    %53 = vector.broadcast %52 : vector<1x32xf32> to vector<8x32xf32>
    %54 = arith.addf %51, %53 : vector<8x32xf32>
    %55 = arith.addf %1, %54 : vector<8x32xf32>
    %cst_29 = arith.constant dense<0.000000e+00> : vector<8xf32>
    %56 = vector.multi_reduction <add>, %55, %cst_29 [1] : vector<8x32xf32> to vector<8xf32>
    %57 = vector.shape_cast %56 : vector<8xf32> to vector<8x1xf32>
    %cst_30 = arith.constant 3.200000e+01 : f32
    %58 = vector.broadcast %cst_30 : f32 to vector<8x1xf32>
    %59 = arith.divf %57, %58 : vector<8x1xf32>
    %60 = vector.broadcast %59 : vector<8x1xf32> to vector<8x32xf32>
    %61 = arith.subf %55, %60 : vector<8x32xf32>
    %62 = arith.mulf %61, %61 : vector<8x32xf32>
    %cst_31 = arith.constant dense<0.000000e+00> : vector<8xf32>
    %63 = vector.multi_reduction <add>, %62, %cst_31 [1] : vector<8x32xf32> to vector<8xf32>
    %64 = vector.shape_cast %63 : vector<8xf32> to vector<8x1xf32>
    %cst_32 = arith.constant 3.200000e+01 : f32
    %65 = vector.broadcast %cst_32 : f32 to vector<8x1xf32>
    %66 = arith.divf %64, %65 : vector<8x1xf32>
    %67 = vector.broadcast %59 : vector<8x1xf32> to vector<8x32xf32>
    %68 = arith.subf %55, %67 : vector<8x32xf32>
    %cst_33 = arith.constant 9.99999974E-6 : f32
    %69 = vector.broadcast %cst_33 : f32 to vector<8x1xf32>
    %70 = arith.addf %66, %69 : vector<8x1xf32>
    %71 = math.rsqrt %70 : vector<8x1xf32>
    %72 = vector.broadcast %71 : vector<8x1xf32> to vector<8x32xf32>
    %73 = arith.mulf %68, %72 : vector<8x32xf32>
    %c0_34 = arith.constant 0 : index
    %c0_35 = arith.constant 0 : index
    %74 = vector.load %arg11[%c0_34, %c0_35] : memref<1x32xf32, #tpu.memory_space<vmem>>, vector<1x32xf32>
    %75 = vector.broadcast %74 : vector<1x32xf32> to vector<8x32xf32>
    %76 = arith.mulf %73, %75 : vector<8x32xf32>
    %c0_36 = arith.constant 0 : index
    %c0_37 = arith.constant 0 : index
    %77 = vector.load %arg12[%c0_36, %c0_37] : memref<1x32xf32, #tpu.memory_space<vmem>>, vector<1x32xf32>
    %78 = vector.broadcast %77 : vector<1x32xf32> to vector<8x32xf32>
    %79 = arith.addf %76, %78 : vector<8x32xf32>
    %80 = arith.truncf %79 : vector<8x32xf32> to vector<8x32xbf16>
    %c0_38 = arith.constant 0 : index
    %c0_39 = arith.constant 0 : index
    %81 = vector.load %arg13[%c0_38, %c0_39] : memref<32x64xbf16, #tpu.memory_space<vmem>>, vector<32x64xbf16>
    %cst_40 = arith.constant dense<0.000000e+00> : vector<8x64xf32>
    %82 = tpu.matmul %80, %81, %cst_40 {dimension_numbers = #tpu.dot_dimension_numbers<[1], [0], [0], [1], [0, 0, 1, 1], [], []>} : vector<8x32xbf16>, vector<32x64xbf16>, vector<8x64xf32> -> vector<8x64xf32>
    %c0_41 = arith.constant 0 : index
    %c0_42 = arith.constant 0 : index
    %83 = vector.load %arg14[%c0_41, %c0_42] : memref<1x64xf32, #tpu.memory_space<vmem>>, vector<1x64xf32>
    %84 = vector.broadcast %83 : vector<1x64xf32> to vector<8x64xf32>
    %85 = arith.addf %82, %84 : vector<8x64xf32>
    %cst_43 = arith.constant 0.000000e+00 : f32
    %86 = vector.broadcast %cst_43 : f32 to vector<8x64xf32>
    %87 = arith.maximumf %85, %86 : vector<8x64xf32>
    %88 = arith.truncf %87 : vector<8x64xf32> to vector<8x64xbf16>
    %c0_44 = arith.constant 0 : index
    %c0_45 = arith.constant 0 : index
    %89 = vector.load %arg15[%c0_44, %c0_45] : memref<64x32xbf16, #tpu.memory_space<vmem>>, vector<64x32xbf16>
    %cst_46 = arith.constant dense<0.000000e+00> : vector<8x32xf32>
    %90 = tpu.matmul %88, %89, %cst_46 {dimension_numbers = #tpu.dot_dimension_numbers<[1], [0], [0], [1], [0, 0, 1, 1], [], []>} : vector<8x64xbf16>, vector<64x32xbf16>, vector<8x32xf32> -> vector<8x32xf32>
    %c0_47 = arith.constant 0 : index
    %c0_48 = arith.constant 0 : index
    %91 = vector.load %arg16[%c0_47, %c0_48] : memref<1x32xf32, #tpu.memory_space<vmem>>, vector<1x32xf32>
    %92 = vector.broadcast %91 : vector<1x32xf32> to vector<8x32xf32>
    %93 = arith.addf %90, %92 : vector<8x32xf32>
    %94 = arith.addf %79, %93 : vector<8x32xf32>
    %cst_49 = arith.constant dense<0.000000e+00> : vector<8xf32>
    %95 = vector.multi_reduction <add>, %94, %cst_49 [1] : vector<8x32xf32> to vector<8xf32>
    %96 = vector.shape_cast %95 : vector<8xf32> to vector<8x1xf32>
    %cst_50 = arith.constant 3.200000e+01 : f32
    %97 = vector.broadcast %cst_50 : f32 to vector<8x1xf32>
    %98 = arith.divf %96, %97 : vector<8x1xf32>
    %99 = vector.broadcast %98 : vector<8x1xf32> to vector<8x32xf32>
    %100 = arith.subf %94, %99 : vector<8x32xf32>
    %101 = arith.mulf %100, %100 : vector<8x32xf32>
    %cst_51 = arith.constant dense<0.000000e+00> : vector<8xf32>
    %102 = vector.multi_reduction <add>, %101, %cst_51 [1] : vector<8x32xf32> to vector<8xf32>
    %103 = vector.shape_cast %102 : vector<8xf32> to vector<8x1xf32>
    %cst_52 = arith.constant 3.200000e+01 : f32
    %104 = vector.broadcast %cst_52 : f32 to vector<8x1xf32>
    %105 = arith.divf %103, %104 : vector<8x1xf32>
    %106 = vector.broadcast %98 : vector<8x1xf32> to vector<8x32xf32>
    %107 = arith.subf %94, %106 : vector<8x32xf32>
    %cst_53 = arith.constant 9.99999974E-6 : f32
    %108 = vector.broadcast %cst_53 : f32 to vector<8x1xf32>
    %109 = arith.addf %105, %108 : vector<8x1xf32>
    %110 = math.rsqrt %109 : vector<8x1xf32>
    %111 = vector.broadcast %110 : vector<8x1xf32> to vector<8x32xf32>
    %112 = arith.mulf %107, %111 : vector<8x32xf32>
    %c0_54 = arith.constant 0 : index
    %c0_55 = arith.constant 0 : index
    %113 = vector.load %arg17[%c0_54, %c0_55] : memref<1x32xf32, #tpu.memory_space<vmem>>, vector<1x32xf32>
    %114 = vector.broadcast %113 : vector<1x32xf32> to vector<8x32xf32>
    %115 = arith.mulf %112, %114 : vector<8x32xf32>
    %c0_56 = arith.constant 0 : index
    %c0_57 = arith.constant 0 : index
    %116 = vector.load %arg18[%c0_56, %c0_57] : memref<1x32xf32, #tpu.memory_space<vmem>>, vector<1x32xf32>
    %117 = vector.broadcast %116 : vector<1x32xf32> to vector<8x32xf32>
    %118 = arith.addf %115, %117 : vector<8x32xf32>
    %c0_58 = arith.constant 0 : index
    %c0_59 = arith.constant 0 : index
    %c0_60 = arith.constant 0 : index
    %119 = vector.load %arg19[%c0_58, %c0_59, %c0_60] : memref<1x8x32xf32, #tpu.memory_space<vmem>>, vector<1x8x32xf32>
    %120 = vector.shape_cast %119 : vector<1x8x32xf32> to vector<8x32xf32>
    %121 = vector.shape_cast %118 : vector<8x32xf32> to vector<1x8x32xf32>
    tpu.vector_store %arg19[%c0_58, %c0_59, %c0_60], %121 {strides = array<i32>} : memref<1x8x32xf32, #tpu.memory_space<vmem>>, vector<1x8x32xf32>,
    return
  }
  func.func @transform_0(%arg0: i32) -> (i32, i32, i32) {
    %c0_i32 = arith.constant 0 : i32
    %c0_i32_0 = arith.constant 0 : i32
    %c0_i32_1 = arith.constant 0 : i32
    return %arg0, %c0_i32, %c0_i32_0 : i32, i32, i32
  }
  func.func @transform_1(%arg0: i32) -> (i32, i32, i32) {
    %c0_i32 = arith.constant 0 : i32
    %c0_i32_0 = arith.constant 0 : i32
    %c0_i32_1 = arith.constant 0 : i32
    return %arg0, %c0_i32, %c0_i32_0 : i32, i32, i32
  }
  func.func @transform_2(%arg0: i32) -> (i32, i32) {
    %c0_i32 = arith.constant 0 : i32
    %c0_i32_0 = arith.constant 0 : i32
    %c0_i32_1 = arith.constant 0 : i32
    return %c0_i32, %c0_i32_0 : i32, i32
  }
  func.func @transform_3(%arg0: i32) -> (i32, i32) {
    %c0_i32 = arith.constant 0 : i32
    %c0_i32_0 = arith.constant 0 : i32
    %c0_i32_1 = arith.constant 0 : i32
    return %c0_i32, %c0_i32_0 : i32, i32
  }
  func.func @transform_4(%arg0: i32) -> (i32, i32) {
    %c0_i32 = arith.constant 0 : i32
    %c0_i32_0 = arith.constant 0 : i32
    %c0_i32_1 = arith.constant 0 : i32
    return %c0_i32, %c0_i32_0 : i32, i32
  }
  func.func @transform_5(%arg0: i32) -> (i32, i32) {
    %c0_i32 = arith.constant 0 : i32
    %c0_i32_0 = arith.constant 0 : i32
    %c0_i32_1 = arith.constant 0 : i32
    return %c0_i32, %c0_i32_0 : i32, i32
  }
  func.func @transform_6(%arg0: i32) -> (i32, i32) {
    %c0_i32 = arith.constant 0 : i32
    %c0_i32_0 = arith.constant 0 : i32
    %c0_i32_1 = arith.constant 0 : i32
    return %c0_i32, %c0_i32_0 : i32, i32
  }
  func.func @transform_7(%arg0: i32) -> (i32, i32) {
    %c0_i32 = arith.constant 0 : i32
    %c0_i32_0 = arith.constant 0 : i32
    %c0_i32_1 = arith.constant 0 : i32
    return %c0_i32, %c0_i32_0 : i32, i32
  }
  func.func @transform_8(%arg0: i32) -> (i32, i32) {
    %c0_i32 = arith.constant 0 : i32
    %c0_i32_0 = arith.constant 0 : i32
    %c0_i32_1 = arith.constant 0 : i32
    return %c0_i32, %c0_i32_0 : i32, i32
  }
  func.func @transform_9(%arg0: i32) -> (i32, i32) {
    %c0_i32 = arith.constant 0 : i32
    %c0_i32_0 = arith.constant 0 : i32
    %c0_i32_1 = arith.constant 0 : i32
    return %c0_i32, %c0_i32_0 : i32, i32
  }
  func.func @transform_10(%arg0: i32) -> (i32, i32) {
    %c0_i32 = arith.constant 0 : i32
    %c0_i32_0 = arith.constant 0 : i32
    %c0_i32_1 = arith.constant 0 : i32
    return %c0_i32, %c0_i32_0 : i32, i32
  }
  func.func @transform_11(%arg0: i32) -> (i32, i32) {
    %c0_i32 = arith.constant 0 : i32
    %c0_i32_0 = arith.constant 0 : i32
    %c0_i32_1 = arith.constant 0 : i32
    return %c0_i32, %c0_i32_0 : i32, i32
  }
  func.func @transform_12(%arg0: i32) -> (i32, i32) {
    %c0_i32 = arith.constant 0 : i32
    %c0_i32_0 = arith.constant 0 : i32
    %c0_i32_1 = arith.constant 0 : i32
    return %c0_i32, %c0_i32_0 : i32, i32
  }
  func.func @transform_13(%arg0: i32) -> (i32, i32) {
    %c0_i32 = arith.constant 0 : i32
    %c0_i32_0 = arith.constant 0 : i32
    %c0_i32_1 = arith.constant 0 : i32
    return %c0_i32, %c0_i32_0 : i32, i32
  }
  func.func @transform_14(%arg0: i32) -> (i32, i32) {
    %c0_i32 = arith.constant 0 : i32
    %c0_i32_0 = arith.constant 0 : i32
    %c0_i32_1 = arith.constant 0 : i32
    return %c0_i32, %c0_i32_0 : i32, i32
  }
  func.func @transform_15(%arg0: i32) -> (i32, i32) {
    %c0_i32 = arith.constant 0 : i32
    %c0_i32_0 = arith.constant 0 : i32
    %c0_i32_1 = arith.constant 0 : i32
    return %c0_i32, %c0_i32_0 : i32, i32
  }
  func.func @transform_16(%arg0: i32) -> (i32, i32) {
    %c0_i32 = arith.constant 0 : i32
    %c0_i32_0 = arith.constant 0 : i32
    %c0_i32_1 = arith.constant 0 : i32
    return %c0_i32, %c0_i32_0 : i32, i32
  }
  func.func @transform_17(%arg0: i32) -> (i32, i32) {
    %c0_i32 = arith.constant 0 : i32
    %c0_i32_0 = arith.constant 0 : i32
    %c0_i32_1 = arith.constant 0 : i32
    return %c0_i32, %c0_i32_0 : i32, i32
  }
  func.func @transform_18(%arg0: i32) -> (i32, i32, i32) {
    %c0_i32 = arith.constant 0 : i32
    %c0_i32_0 = arith.constant 0 : i32
    %c0_i32_1 = arith.constant 0 : i32
    return %arg0, %c0_i32, %c0_i32_0 : i32, i32, i32
  }
}

</mosaic_0001>

<llo_original>
// kernel: tpu_custom_call.1
$region0: #{tpu_custom_call.1}
  #allocation0 [shape = 'u32[]', space=smem, size = 0x4, offset = 0x4, fixed_abs, tag = 'smem constant byte address 0x4 - core index']
  #allocation1 [shape = 'u32[72,128]{1,0:T(1,128)}', space=vmem, size = 0x9000, scoped, tag = 'internal scratch']
  %s0 = inlined_call_operand.vmem [shape: f32[2,8,32], index: 0, kind: input, shape index: {}]
  %s1 = inlined_call_operand.hbm [shape: f32[2,1,8], index: 1, kind: input, shape index: {}]
  %s2 = inlined_call_operand.vmem [shape: bf16[32,32], index: 2, kind: input, shape index: {}]
  %s3 = inlined_call_operand.vmem [shape: f32[1,32], index: 3, kind: input, shape index: {}]
  %s4 = inlined_call_operand.vmem [shape: bf16[32,32], index: 4, kind: input, shape index: {}]
  %s5 = inlined_call_operand.vmem [shape: f32[1,32], index: 5, kind: input, shape index: {}]
  %s6 = inlined_call_operand.hbm [shape: bf16[32,32], index: 6, kind: input, shape index: {}]
  %s7 = inlined_call_operand.vmem [shape: f32[1,32], index: 7, kind: input, shape index: {}]
  %s8 = inlined_call_operand.hbm [shape: bf16[32,32], index: 8, kind: input, shape index: {}]
  %s9 = inlined_call_operand.vmem [shape: f32[1,32], index: 9, kind: input, shape index: {}]
  %s10 = inlined_call_operand.vmem [shape: f32[1,32], index: 10, kind: input, shape index: {}]
  %s11 = inlined_call_operand.vmem [shape: f32[1,32], index: 11, kind: input, shape index: {}]
  %s12 = inlined_call_operand.hbm [shape: bf16[32,64], index: 12, kind: input, shape index: {}]
  %s13 = inlined_call_operand.vmem [shape: f32[1,64], index: 13, kind: input, shape index: {}]
  %s14 = inlined_call_operand.vmem [shape: bf16[64,32], index: 14, kind: input, shape index: {}]
  %s15 = inlined_call_operand.vmem [shape: f32[1,32], index: 15, kind: input, shape index: {}]
  %s16 = inlined_call_operand.vmem [shape: f32[1,32], index: 16, kind: input, shape index: {}]
  %s17 = inlined_call_operand.vmem [shape: f32[1,32], index: 17, kind: input, shape index: {}]
  %s18 = inlined_call_operand.hbm [shape: f32[2,8,32], index: 18, kind: output, shape index: {}]
  %s19 = sld [smem:[#allocation0]]
  $region121: #{tpu_custom_call.1} parent=0
    _
  %s21 = ssub.s32 1, %s19
  %s22 = scalar_select 0, %s21, %s19
  $region1: #{tpu_custom_call.1} parent=0
    #allocation2 [shape = 'u8[1024]{0}', space=vmem, size = 0x400, scoped, tag = 'input window, operand 1']
    #allocation3 [shape = 's32[2]{0}', space=sflag, size = 0x8, scoped, tag = 'scoped memory for tpu_custom_call.1']
    #allocation4 [shape = 's32[2]{0}', space=sflag, size = 0x8, scoped, tag = 'scoped memory for tpu_custom_call.1']
    #allocation5 [shape = 'u8[8192]{0}', space=vmem, size = 0x2000, scoped, tag = 'input window, operand 6, single buffered']
    #allocation6 [shape = 's32[1]{0}', space=sflag, size = 0x4, scoped, tag = 'scoped memory for tpu_custom_call.1']
    #allocation7 [shape = 'u8[8192]{0}', space=vmem, size = 0x2000, scoped, tag = 'input window, operand 8, single buffered']
    #allocation8 [shape = 'u8[8192]{0}', space=vmem, size = 0x2000, scoped, tag = 'input window, operand 12, single buffered']
    #allocation9 [shape = 's32[1]{0}', space=sflag, size = 0x4, scoped, tag = 'scoped memory for tpu_custom_call.1']
    #allocation10 [shape = 'u8[8192]{0}', space=vmem, size = 0x2000, scoped, tag = 'output window, operand 0']
    %23 = vsyncpa [#allocation3], 0
    %s24 = scalar_lea.sflag [#allocation3], 1
    %25 = vsyncpa %s24, 0
    %26 = vsyncpa [#allocation6], 0
    %27 = vsyncpa [#allocation9], 0
    %28 = vsyncpa [#allocation4], 0
    %s29 = scalar_lea.sflag [#allocation4], 1
    %30 = vsyncpa %s29, 0
    loop: start=0, step=1, limit=4
    $region2: #{tpu_custom_call.1} parent=1 // loop_pre_header
      _
    $region3: #{tpu_custom_call.1} parent=1 // loop_header
      %s32 = sphi 0, %s36
      %p33 = scmp.ge.s32.totalorder %s32, 4
      %s42 = sphi 0, %s44
      %s45 = sphi 0, %s42
      %s46 = sphi 0, %s45
      %s62 = sphi 0, %s46
      %s68 = sphi 0, %s70
      %s71 = sphi 0, %s68
      %s72 = sphi 0, %s71
      %s88 = sphi 0, %s72
      %s92 = sphi 0, %s92
      %s94 = sphi 0, %s92
      %s95 = sphi 0, %s94
      %s109 = sphi 0, %s95
      %s113 = sphi 0, %s113
      %s115 = sphi 0, %s113
      %s116 = sphi 0, %s115
      %s130 = sphi 0, %s116
      %s134 = sphi 0, %s134
      %s136 = sphi 0, %s134
      %s137 = sphi 0, %s136
      %s151 = sphi 0, %s137
      %s155 = sphi 0, %s155
      %s157 = sphi 0, %s155
      %s158 = sphi 0, %s157
      %s172 = sphi 0, %s158
      %s176 = sphi 0, %s176
      %s178 = sphi 0, %s176
      %s179 = sphi 0, %s178
      %s193 = sphi 0, %s179
      %s197 = sphi 0, %s197
      %s199 = sphi 0, %s197
      %s200 = sphi 0, %s199
      %s214 = sphi 0, %s200
      %s218 = sphi 0, %s218
      %s220 = sphi 0, %s218
      %s221 = sphi 0, %s220
      %s235 = sphi 0, %s221
      %s239 = sphi 0, %s239
      %s241 = sphi 0, %s239
      %s242 = sphi 0, %s241
      %s256 = sphi 0, %s242
      %s260 = sphi 0, %s260
      %s262 = sphi 0, %s260
      %s263 = sphi 0, %s262
      %s277 = sphi 0, %s263
      %s281 = sphi 0, %s281
      %s283 = sphi 0, %s281
      %s284 = sphi 0, %s283
      %s298 = sphi 0, %s284
      %s302 = sphi 0, %s302
      %s304 = sphi 0, %s302
      %s305 = sphi 0, %s304
      %s319 = sphi 0, %s305
      %s323 = sphi 0, %s323
      %s325 = sphi 0, %s323
      %s326 = sphi 0, %s325
      %s340 = sphi 0, %s326
      %s344 = sphi 0, %s344
      %s346 = sphi 0, %s344
      %s347 = sphi 0, %s346
      %s361 = sphi 0, %s347
      %s365 = sphi 0, %s365
      %s367 = sphi 0, %s365
      %s368 = sphi 0, %s367
      %s382 = sphi 0, %s368
      %s386 = sphi 0, %s386
      %s388 = sphi 0, %s386
      %s389 = sphi 0, %s388
      %s403 = sphi 0, %s389
      %s407 = sphi 0, %s407
      %s409 = sphi 0, %s407
      %s410 = sphi 0, %s409
      %s424 = sphi 0, %s410
      %s430 = sphi 0, %s432
      %s433 = sphi 0, %s430
      %s434 = sphi 0, %s433
      %s450 = sphi 0, %s434
    $region4: #{tpu_custom_call.1} parent=1 // loop_header_branch
      %35 = sbr.rel (%p33) target = $region8
    $region5: #{tpu_custom_call.1} parent=1 // loop_body
      %s37 = ssub.s32 %s32, 1
      %s38 = ssub.s32 %s32, 2
      %s39 = sadd.s32 %s32, 1
      %s40 = ssub.s32 %s32, %s39
      %p41 = scmp.eq.s32.totalorder %s40, 0
      %s43 = sadd.s32 %s42, 1
      %s44 = scalar_select %p41, %s42, %s43
      %p47 = pneg %p41
      %p48 = scmp.eq.s32.totalorder %s32, 1
      %p49 = por %p47, %p48
      %p50 = scmp.ne.s32.totalorder %s42, %s45
      %p51 = scmp.eq.s32.totalorder %s32, 0
      %p52 = por %p50, %p51
      %p53 = scmp.ne.s32.totalorder %s42, %s45
      %p54 = scmp.eq.s32.totalorder %s37, 1
      %p55 = por %p53, %p54
      %p56 = scmp.ne.s32.totalorder %s45, %s46
      %p57 = scmp.eq.s32.totalorder %s37, 0
      %p58 = por %p56, %p57
      %p59 = scmp.ne.s32.totalorder %s45, %s46
      %p60 = scmp.eq.s32.totalorder %s38, 1
      %p61 = por %p59, %p60
      %p63 = scmp.ne.s32.totalorder %s46, %s62
      %p64 = scmp.eq.s32.totalorder %s38, 0
      %p65 = por %p63, %p64
      %s66 = ssub.s32 %s32, %s39
      %p67 = scmp.eq.s32.totalorder %s66, 0
      %s69 = sadd.s32 %s68, 1
      %s70 = scalar_select %p67, %s68, %s69
      %p73 = pneg %p67
      %p74 = scmp.eq.s32.totalorder %s32, 1
      %p75 = por %p73, %p74
      %p76 = scmp.ne.s32.totalorder %s68, %s71
      %p77 = scmp.eq.s32.totalorder %s32, 0
      %p78 = por %p76, %p77
      %p79 = scmp.ne.s32.totalorder %s68, %s71
      %p80 = scmp.eq.s32.totalorder %s37, 1
      %p81 = por %p79, %p80
      %p82 = scmp.ne.s32.totalorder %s71, %s72
      %p83 = scmp.eq.s32.totalorder %s37, 0
      %p84 = por %p82, %p83
      %p85 = scmp.ne.s32.totalorder %s71, %s72
      %p86 = scmp.eq.s32.totalorder %s38, 1
      %p87 = por %p85, %p86
      %p89 = scmp.ne.s32.totalorder %s72, %s88
      %p90 = scmp.eq.s32.totalorder %s38, 0
      %p91 = por %p89, %p90
      %s93 = sadd.s32 %s92, 1
      %p96 = scmp.eq.s32.totalorder %s32, 1
      %p97 = scmp.ne.s32.totalorder %s92, %s94
      %p98 = scmp.eq.s32.totalorder %s32, 0
      %p99 = por %p97, %p98
      %p100 = scmp.ne.s32.totalorder %s92, %s94
      %p101 = scmp.eq.s32.totalorder %s37, 1
      %p102 = por %p100, %p101
      %p103 = scmp.ne.s32.totalorder %s94, %s95
      %p104 = scmp.eq.s32.totalorder %s37, 0
      %p105 = por %p103, %p104
      %p106 = scmp.ne.s32.totalorder %s94, %s95
      %p107 = scmp.eq.s32.totalorder %s38, 1
      %p108 = por %p106, %p107
      %p110 = scmp.ne.s32.totalorder %s95, %s109
      %p111 = scmp.eq.s32.totalorder %s38, 0
      %p112 = por %p110, %p111
      %s114 = sadd.s32 %s113, 1
      %p117 = scmp.eq.s32.totalorder %s32, 1
      %p118 = scmp.ne.s32.totalorder %s113, %s115
      %p119 = scmp.eq.s32.totalorder %s32, 0
      %p120 = por %p118, %p119
      %p121 = scmp.ne.s32.totalorder %s113, %s115
      %p122 = scmp.eq.s32.totalorder %s37, 1
      %p123 = por %p121, %p122
      %p124 = scmp.ne.s32.totalorder %s115, %s116
      %p125 = scmp.eq.s32.totalorder %s37, 0
      %p126 = por %p124, %p125
      %p127 = scmp.ne.s32.totalorder %s115, %s116
      %p128 = scmp.eq.s32.totalorder %s38, 1
      %p129 = por %p127, %p128
      %p131 = scmp.ne.s32.totalorder %s116, %s130
      %p132 = scmp.eq.s32.totalorder %s38, 0
      %p133 = por %p131, %p132
      %s135 = sadd.s32 %s134, 1
      %p138 = scmp.eq.s32.totalorder %s32, 1
      %p139 = scmp.ne.s32.totalorder %s134, %s136
      %p140 = scmp.eq.s32.totalorder %s32, 0
      %p141 = por %p139, %p140
      %p142 = scmp.ne.s32.totalorder %s134, %s136
      %p143 = scmp.eq.s32.totalorder %s37, 1
      %p144 = por %p142, %p143
      %p145 = scmp.ne.s32.totalorder %s136, %s137
      %p146 = scmp.eq.s32.totalorder %s37, 0
      %p147 = por %p145, %p146
      %p148 = scmp.ne.s32.totalorder %s136, %s137
      %p149 = scmp.eq.s32.totalorder %s38, 1
      %p150 = por %p148, %p149
      %p152 = scmp.ne.s32.totalorder %s137, %s151
      %p153 = scmp.eq.s32.totalorder %s38, 0
      %p154 = por %p152, %p153
      %s156 = sadd.s32 %s155, 1
      %p159 = scmp.eq.s32.totalorder %s32, 1
      %p160 = scmp.ne.s32.totalorder %s155, %s157
      %p161 = scmp.eq.s32.totalorder %s32, 0
      %p162 = por %p160, %p161
      %p163 = scmp.ne.s32.totalorder %s155, %s157
      %p164 = scmp.eq.s32.totalorder %s37, 1
      %p165 = por %p163, %p164
      %p166 = scmp.ne.s32.totalorder %s157, %s158
      %p167 = scmp.eq.s32.totalorder %s37, 0
      %p168 = por %p166, %p167
      %p169 = scmp.ne.s32.totalorder %s157, %s158
      %p170 = scmp.eq.s32.totalorder %s38, 1
      %p171 = por %p169, %p170
      %p173 = scmp.ne.s32.totalorder %s158, %s172
      %p174 = scmp.eq.s32.totalorder %s38, 0
      %p175 = por %p173, %p174
      %s177 = sadd.s32 %s176, 1
      %p180 = scmp.eq.s32.totalorder %s32, 1
      %p181 = scmp.ne.s32.totalorder %s176, %s178
      %p182 = scmp.eq.s32.totalorder %s32, 0
      %p183 = por %p181, %p182
      %p184 = scmp.ne.s32.totalorder %s176, %s178
      %p185 = scmp.eq.s32.totalorder %s37, 1
      %p186 = por %p184, %p185
      %p187 = scmp.ne.s32.totalorder %s178, %s179
      %p188 = scmp.eq.s32.totalorder %s37, 0
      %p189 = por %p187, %p188
      %p190 = scmp.ne.s32.totalorder %s178, %s179
      %p191 = scmp.eq.s32.totalorder %s38, 1
      %p192 = por %p190, %p191
      %p194 = scmp.ne.s32.totalorder %s179, %s193
      %p195 = scmp.eq.s32.totalorder %s38, 0
      %p196 = por %p194, %p195
      %s198 = sadd.s32 %s197, 1
      %p201 = scmp.eq.s32.totalorder %s32, 1
      %p202 = scmp.ne.s32.totalorder %s197, %s199
      %p203 = scmp.eq.s32.totalorder %s32, 0
      %p204 = por %p202, %p203
      %p205 = scmp.ne.s32.totalorder %s197, %s199
      %p206 = scmp.eq.s32.totalorder %s37, 1
      %p207 = por %p205, %p206
      %p208 = scmp.ne.s32.totalorder %s199, %s200
      %p209 = scmp.eq.s32.totalorder %s37, 0
      %p210 = por %p208, %p209
      %p211 = scmp.ne.s32.totalorder %s199, %s200
      %p212 = scmp.eq.s32.totalorder %s38, 1
      %p213 = por %p211, %p212
      %p215 = scmp.ne.s32.totalorder %s200, %s214
      %p216 = scmp.eq.s32.totalorder %s38, 0
      %p217 = por %p215, %p216
      %s219 = sadd.s32 %s218, 1
      %p222 = scmp.eq.s32.totalorder %s32, 1
      %p223 = scmp.ne.s32.totalorder %s218, %s220
      %p224 = scmp.eq.s32.totalorder %s32, 0
      %p225 = por %p223, %p224
      %p226 = scmp.ne.s32.totalorder %s218, %s220
      %p227 = scmp.eq.s32.totalorder %s37, 1
      %p228 = por %p226, %p227
      %p229 = scmp.ne.s32.totalorder %s220, %s221
      %p230 = scmp.eq.s32.totalorder %s37, 0
      %p231 = por %p229, %p230
      %p232 = scmp.ne.s32.totalorder %s220, %s221
      %p233 = scmp.eq.s32.totalorder %s38, 1
      %p234 = por %p232, %p233
      %p236 = scmp.ne.s32.totalorder %s221, %s235
      %p237 = scmp.eq.s32.totalorder %s38, 0
      %p238 = por %p236, %p237
      %s240 = sadd.s32 %s239, 1
      %p243 = scmp.eq.s32.totalorder %s32, 1
      %p244 = scmp.ne.s32.totalorder %s239, %s241
      %p245 = scmp.eq.s32.totalorder %s32, 0
      %p246 = por %p244, %p245
      %p247 = scmp.ne.s32.totalorder %s239, %s241
      %p248 = scmp.eq.s32.totalorder %s37, 1
      %p249 = por %p247, %p248
      %p250 = scmp.ne.s32.totalorder %s241, %s242
      %p251 = scmp.eq.s32.totalorder %s37, 0
      %p252 = por %p250, %p251
      %p253 = scmp.ne.s32.totalorder %s241, %s242
      %p254 = scmp.eq.s32.totalorder %s38, 1
      %p255 = por %p253, %p254
      %p257 = scmp.ne.s32.totalorder %s242, %s256
      %p258 = scmp.eq.s32.totalorder %s38, 0
      %p259 = por %p257, %p258
      %s261 = sadd.s32 %s260, 1
      %p264 = scmp.eq.s32.totalorder %s32, 1
      %p265 = scmp.ne.s32.totalorder %s260, %s262
      %p266 = scmp.eq.s32.totalorder %s32, 0
      %p267 = por %p265, %p266
      %p268 = scmp.ne.s32.totalorder %s260, %s262
      %p269 = scmp.eq.s32.totalorder %s37, 1
      %p270 = por %p268, %p269
      %p271 = scmp.ne.s32.totalorder %s262, %s263
      %p272 = scmp.eq.s32.totalorder %s37, 0
      %p273 = por %p271, %p272
      %p274 = scmp.ne.s32.totalorder %s262, %s263
      %p275 = scmp.eq.s32.totalorder %s38, 1
      %p276 = por %p274, %p275
      %p278 = scmp.ne.s32.totalorder %s263, %s277
      %p279 = scmp.eq.s32.totalorder %s38, 0
      %p280 = por %p278, %p279
      %s282 = sadd.s32 %s281, 1
      %p285 = scmp.eq.s32.totalorder %s32, 1
      %p286 = scmp.ne.s32.totalorder %s281, %s283
      %p287 = scmp.eq.s32.totalorder %s32, 0
      %p288 = por %p286, %p287
      %p289 = scmp.ne.s32.totalorder %s281, %s283
      %p290 = scmp.eq.s32.totalorder %s37, 1
      %p291 = por %p289, %p290
      %p292 = scmp.ne.s32.totalorder %s283, %s284
      %p293 = scmp.eq.s32.totalorder %s37, 0
      %p294 = por %p292, %p293
      %p295 = scmp.ne.s32.totalorder %s283, %s284
      %p296 = scmp.eq.s32.totalorder %s38, 1
      %p297 = por %p295, %p296
      %p299 = scmp.ne.s32.totalorder %s284, %s298
      %p300 = scmp.eq.s32.totalorder %s38, 0
      %p301 = por %p299, %p300
      %s303 = sadd.s32 %s302, 1
      %p306 = scmp.eq.s32.totalorder %s32, 1
      %p307 = scmp.ne.s32.totalorder %s302, %s304
      %p308 = scmp.eq.s32.totalorder %s32, 0
      %p309 = por %p307, %p308
      %p310 = scmp.ne.s32.totalorder %s302, %s304
      %p311 = scmp.eq.s32.totalorder %s37, 1
      %p312 = por %p310, %p311
      %p313 = scmp.ne.s32.totalorder %s304, %s305
      %p314 = scmp.eq.s32.totalorder %s37, 0
      %p315 = por %p313, %p314
      %p316 = scmp.ne.s32.totalorder %s304, %s305
      %p317 = scmp.eq.s32.totalorder %s38, 1
      %p318 = por %p316, %p317
      %p320 = scmp.ne.s32.totalorder %s305, %s319
      %p321 = scmp.eq.s32.totalorder %s38, 0
      %p322 = por %p320, %p321
      %s324 = sadd.s32 %s323, 1
      %p327 = scmp.eq.s32.totalorder %s32, 1
      %p328 = scmp.ne.s32.totalorder %s323, %s325
      %p329 = scmp.eq.s32.totalorder %s32, 0
      %p330 = por %p328, %p329
      %p331 = scmp.ne.s32.totalorder %s323, %s325
      %p332 = scmp.eq.s32.totalorder %s37, 1
      %p333 = por %p331, %p332
      %p334 = scmp.ne.s32.totalorder %s325, %s326
      %p335 = scmp.eq.s32.totalorder %s37, 0
      %p336 = por %p334, %p335
      %p337 = scmp.ne.s32.totalorder %s325, %s326
      %p338 = scmp.eq.s32.totalorder %s38, 1
      %p339 = por %p337, %p338
      %p341 = scmp.ne.s32.totalorder %s326, %s340
      %p342 = scmp.eq.s32.totalorder %s38, 0
      %p343 = por %p341, %p342
      %s345 = sadd.s32 %s344, 1
      %p348 = scmp.eq.s32.totalorder %s32, 1
      %p349 = scmp.ne.s32.totalorder %s344, %s346
      %p350 = scmp.eq.s32.totalorder %s32, 0
      %p351 = por %p349, %p350
      %p352 = scmp.ne.s32.totalorder %s344, %s346
      %p353 = scmp.eq.s32.totalorder %s37, 1
      %p354 = por %p352, %p353
      %p355 = scmp.ne.s32.totalorder %s346, %s347
      %p356 = scmp.eq.s32.totalorder %s37, 0
      %p357 = por %p355, %p356
      %p358 = scmp.ne.s32.totalorder %s346, %s347
      %p359 = scmp.eq.s32.totalorder %s38, 1
      %p360 = por %p358, %p359
      %p362 = scmp.ne.s32.totalorder %s347, %s361
      %p363 = scmp.eq.s32.totalorder %s38, 0
      %p364 = por %p362, %p363
      %s366 = sadd.s32 %s365, 1
      %p369 = scmp.eq.s32.totalorder %s32, 1
      %p370 = scmp.ne.s32.totalorder %s365, %s367
      %p371 = scmp.eq.s32.totalorder %s32, 0
      %p372 = por %p370, %p371
      %p373 = scmp.ne.s32.totalorder %s365, %s367
      %p374 = scmp.eq.s32.totalorder %s37, 1
      %p375 = por %p373, %p374
      %p376 = scmp.ne.s32.totalorder %s367, %s368
      %p377 = scmp.eq.s32.totalorder %s37, 0
      %p378 = por %p376, %p377
      %p379 = scmp.ne.s32.totalorder %s367, %s368
      %p380 = scmp.eq.s32.totalorder %s38, 1
      %p381 = por %p379, %p380
      %p383 = scmp.ne.s32.totalorder %s368, %s382
      %p384 = scmp.eq.s32.totalorder %s38, 0
      %p385 = por %p383, %p384
      %s387 = sadd.s32 %s386, 1
      %p390 = scmp.eq.s32.totalorder %s32, 1
      %p391 = scmp.ne.s32.totalorder %s386, %s388
      %p392 = scmp.eq.s32.totalorder %s32, 0
      %p393 = por %p391, %p392
      %p394 = scmp.ne.s32.totalorder %s386, %s388
      %p395 = scmp.eq.s32.totalorder %s37, 1
      %p396 = por %p394, %p395
      %p397 = scmp.ne.s32.totalorder %s388, %s389
      %p398 = scmp.eq.s32.totalorder %s37, 0
      %p399 = por %p397, %p398
      %p400 = scmp.ne.s32.totalorder %s388, %s389
      %p401 = scmp.eq.s32.totalorder %s38, 1
      %p402 = por %p400, %p401
      %p404 = scmp.ne.s32.totalorder %s389, %s403
      %p405 = scmp.eq.s32.totalorder %s38, 0
      %p406 = por %p404, %p405
      %s408 = sadd.s32 %s407, 1
      %p411 = scmp.eq.s32.totalorder %s32, 1
      %p412 = scmp.ne.s32.totalorder %s407, %s409
      %p413 = scmp.eq.s32.totalorder %s32, 0
      %p414 = por %p412, %p413
      %p415 = scmp.ne.s32.totalorder %s407, %s409
      %p416 = scmp.eq.s32.totalorder %s37, 1
      %p417 = por %p415, %p416
      %p418 = scmp.ne.s32.totalorder %s409, %s410
      %p419 = scmp.eq.s32.totalorder %s37, 0
      %p420 = por %p418, %p419
      %p421 = scmp.ne.s32.totalorder %s409, %s410
      %p422 = scmp.eq.s32.totalorder %s38, 1
      %p423 = por %p421, %p422
      %p425 = scmp.ne.s32.totalorder %s410, %s424
      %p426 = scmp.eq.s32.totalorder %s38, 0
      %p427 = por %p425, %p426
      %s428 = ssub.s32 %s32, %s39
      %p429 = scmp.eq.s32.totalorder %s428, 0
      %s431 = sadd.s32 %s430, 1
      %s432 = scalar_select %p429, %s430, %s431
      %p435 = pneg %p429
      %p436 = scmp.eq.s32.totalorder %s32, 1
      %p437 = por %p435, %p436
      %p438 = scmp.ne.s32.totalorder %s430, %s433
      %p439 = scmp.eq.s32.totalorder %s32, 0
      %p440 = por %p438, %p439
      %p441 = scmp.ne.s32.totalorder %s430, %s433
      %p442 = scmp.eq.s32.totalorder %s37, 1
      %p443 = por %p441, %p442
      %p444 = scmp.ne.s32.totalorder %s433, %s434
      %p445 = scmp.eq.s32.totalorder %s37, 0
      %p446 = por %p444, %p445
      %p447 = scmp.ne.s32.totalorder %s433, %s434
      %p448 = scmp.eq.s32.totalorder %s38, 1
      %p449 = por %p447, %p448
      %p451 = scmp.ne.s32.totalorder %s434, %s450
      %p452 = scmp.eq.s32.totalorder %s38, 0
      %p453 = por %p451, %p452
      %p454 = scmp.le.s32.totalorder 1, %s32
      %p455 = scmp.lt.s32.totalorder %s32, 3
      %p456 = pnand %p454, %p455
      %p457 = pneg %p456
      // Predicated region
      $region9: #{tpu_custom_call.1} parent=5 // pred_check
        _
      $region10: #{tpu_custom_call.1} parent=5 // pred_check_branch
        %459 = sbr.rel (%p456) target = $region12
      $region11: #{tpu_custom_call.1} parent=5 // pred_region
        %s460 = ssub.s32 %s32, 1
        // Predicated region
        $region13: #{tpu_custom_call.1} parent=11 // pred_check
          %p461 = pneg %p105
        $region14: #{tpu_custom_call.1} parent=11 // pred_check_branch
          %463 = sbr.rel (%p461) target = $region16
        $region15: #{tpu_custom_call.1} parent=11 // pred_region
          _
        $region16: #{tpu_custom_call.1} parent=11 // pred_fallthru
          _
        // Predicated region
        $region17: #{tpu_custom_call.1} parent=11 // pred_check
          %p464 = pneg %p126
        $region18: #{tpu_custom_call.1} parent=11 // pred_check_branch
          %466 = sbr.rel (%p464) target = $region20
        $region19: #{tpu_custom_call.1} parent=11 // pred_region
          _
        $region20: #{tpu_custom_call.1} parent=11 // pred_fallthru
          _
        // Predicated region
        $region21: #{tpu_custom_call.1} parent=11 // pred_check
          %p467 = pneg %p147
        $region22: #{tpu_custom_call.1} parent=11 // pred_check_branch
          %469 = sbr.rel (%p467) target = $region24
        $region23: #{tpu_custom_call.1} parent=11 // pred_region
          _
        $region24: #{tpu_custom_call.1} parent=11 // pred_fallthru
          _
        // Predicated region
        $region25: #{tpu_custom_call.1} parent=11 // pred_check
          %p470 = pneg %p168
        $region26: #{tpu_custom_call.1} parent=11 // pred_check_branch
          %472 = sbr.rel (%p470) target = $region28
        $region27: #{tpu_custom_call.1} parent=11 // pred_region
          _
        $region28: #{tpu_custom_call.1} parent=11 // pred_fallthru
          _
        // Predicated region
        $region29: #{tpu_custom_call.1} parent=11 // pred_check
          %p473 = pneg %p189
        $region30: #{tpu_custom_call.1} parent=11 // pred_check_branch
          %475 = sbr.rel (%p473) target = $region32
        $region31: #{tpu_custom_call.1} parent=11 // pred_region
          %477 = vsyncadd [#allocation6], 0
          %s478 = sshll.u32 %s6, 4
          %s479 = int_to_ptr.hbm [resolvable:$true] %s478
          %s480 = sshll.u32 [#allocation5], 4
          %s481 = int_to_ptr.vmem [resolvable:$true] %s480
          %486 = dma.hbm_to_vmem [thread:$0]  %s479, 256, %s481, [#allocation6], 64, 64, 4
        $region32: #{tpu_custom_call.1} parent=11 // pred_fallthru
          _
        // Predicated region
        $region33: #{tpu_custom_call.1} parent=11 // pred_check
          %p487 = pneg %p210
        $region34: #{tpu_custom_call.1} parent=11 // pred_check_branch
          %489 = sbr.rel (%p487) target = $region36
        $region35: #{tpu_custom_call.1} parent=11 // pred_region
          _
        $region36: #{tpu_custom_call.1} parent=11 // pred_fallthru
          _
        // Predicated region
        $region37: #{tpu_custom_call.1} parent=11 // pred_check
          %p490 = pneg %p231
        $region38: #{tpu_custom_call.1} parent=11 // pred_check_branch
          %492 = sbr.rel (%p490) target = $region40
        $region39: #{tpu_custom_call.1} parent=11 // pred_region
          %494 = vsyncadd [#allocation6], 0
          %s495 = sshll.u32 %s8, 4
          %s496 = int_to_ptr.hbm [resolvable:$true] %s495
          %s497 = sshll.u32 [#allocation7], 4
          %s498 = int_to_ptr.vmem [resolvable:$true] %s497
          %503 = dma.hbm_to_vmem [thread:$0]  %s496, 256, %s498, [#allocation6], 64, 64, 4
        $region40: #{tpu_custom_call.1} parent=11 // pred_fallthru
          _
        // Predicated region
        $region41: #{tpu_custom_call.1} parent=11 // pred_check
          %p504 = pneg %p252
        $region42: #{tpu_custom_call.1} parent=11 // pred_check_branch
          %506 = sbr.rel (%p504) target = $region44
        $region43: #{tpu_custom_call.1} parent=11 // pred_region
          _
        $region44: #{tpu_custom_call.1} parent=11 // pred_fallthru
          _
        // Predicated region
        $region45: #{tpu_custom_call.1} parent=11 // pred_check
          %p507 = pneg %p273
        $region46: #{tpu_custom_call.1} parent=11 // pred_check_branch
          %509 = sbr.rel (%p507) target = $region48
        $region47: #{tpu_custom_call.1} parent=11 // pred_region
          _
        $region48: #{tpu_custom_call.1} parent=11 // pred_fallthru
          _
        // Predicated region
        $region49: #{tpu_custom_call.1} parent=11 // pred_check
          %p510 = pneg %p294
        $region50: #{tpu_custom_call.1} parent=11 // pred_check_branch
          %512 = sbr.rel (%p510) target = $region52
        $region51: #{tpu_custom_call.1} parent=11 // pred_region
          _
        $region52: #{tpu_custom_call.1} parent=11 // pred_fallthru
          _
        // Predicated region
        $region53: #{tpu_custom_call.1} parent=11 // pred_check
          %p513 = pneg %p315
        $region54: #{tpu_custom_call.1} parent=11 // pred_check_branch
          %515 = sbr.rel (%p513) target = $region56
        $region55: #{tpu_custom_call.1} parent=11 // pred_region
          %517 = vsyncadd [#allocation9], 0
          %s518 = sshll.u32 %s12, 4
          %s519 = int_to_ptr.hbm [resolvable:$true] %s518
          %s520 = sshll.u32 [#allocation8], 4
          %s521 = int_to_ptr.vmem [resolvable:$true] %s520
          %526 = dma.hbm_to_vmem [thread:$0]  %s519, 256, %s521, [#allocation9], 64, 64, 4
        $region56: #{tpu_custom_call.1} parent=11 // pred_fallthru
          _
        // Predicated region
        $region57: #{tpu_custom_call.1} parent=11 // pred_check
          %p527 = pneg %p336
        $region58: #{tpu_custom_call.1} parent=11 // pred_check_branch
          %529 = sbr.rel (%p527) target = $region60
        $region59: #{tpu_custom_call.1} parent=11 // pred_region
          _
        $region60: #{tpu_custom_call.1} parent=11 // pred_fallthru
          _
        // Predicated region
        $region61: #{tpu_custom_call.1} parent=11 // pred_check
          %p530 = pneg %p357
        $region62: #{tpu_custom_call.1} parent=11 // pred_check_branch
          %532 = sbr.rel (%p530) target = $region64
        $region63: #{tpu_custom_call.1} parent=11 // pred_region
          _
        $region64: #{tpu_custom_call.1} parent=11 // pred_fallthru
          _
        // Predicated region
        $region65: #{tpu_custom_call.1} parent=11 // pred_check
          %p533 = pneg %p378
        $region66: #{tpu_custom_call.1} parent=11 // pred_check_branch
          %535 = sbr.rel (%p533) target = $region68
        $region67: #{tpu_custom_call.1} parent=11 // pred_region
          _
        $region68: #{tpu_custom_call.1} parent=11 // pred_fallthru
          _
        // Predicated region
        $region69: #{tpu_custom_call.1} parent=11 // pred_check
          %p536 = pneg %p399
        $region70: #{tpu_custom_call.1} parent=11 // pred_check_branch
          %538 = sbr.rel (%p536) target = $region72
        $region71: #{tpu_custom_call.1} parent=11 // pred_region
          _
        $region72: #{tpu_custom_call.1} parent=11 // pred_fallthru
          _
        // Predicated region
        $region73: #{tpu_custom_call.1} parent=11 // pred_check
          %p539 = pneg %p420
        $region74: #{tpu_custom_call.1} parent=11 // pred_check_branch
          %541 = sbr.rel (%p539) target = $region76
        $region75: #{tpu_custom_call.1} parent=11 // pred_region
          _
        $region76: #{tpu_custom_call.1} parent=11 // pred_fallthru
          _
      $region12: #{tpu_custom_call.1} parent=5 // pred_fallthru
        _
      %p542 = scmp.lt.s32.totalorder %s32, 2
      // Predicated region
      $region77: #{tpu_custom_call.1} parent=5 // pred_check
        %p543 = pneg %p542
      $region78: #{tpu_custom_call.1} parent=5 // pred_check_branch
        %545 = sbr.rel (%p543) target = $region80
      $region79: #{tpu_custom_call.1} parent=5 // pred_region
        // Predicated region
        $region81: #{tpu_custom_call.1} parent=79 // pred_check
          %p546 = pneg %p52
        $region82: #{tpu_custom_call.1} parent=79 // pred_check_branch
          %548 = sbr.rel (%p546) target = $region84
        $region83: #{tpu_custom_call.1} parent=79 // pred_region
          %p549 = scmp.lt.s32.totalorder %s32, 1
          %s550 = scalar_select %p549, %s32, 1
          %s551 = smul.addr %s550, 8
          %s552 = scalar_lea.vmem %s0, %s551
        $region84: #{tpu_custom_call.1} parent=79 // pred_fallthru
          _
        // Predicated region
        $region85: #{tpu_custom_call.1} parent=79 // pred_check
          %p553 = pneg %p78
        $region86: #{tpu_custom_call.1} parent=79 // pred_check_branch
          %555 = sbr.rel (%p553) target = $region88
        $region87: #{tpu_custom_call.1} parent=79 // pred_region
          %s556 = sand.u32 %s68, 1
          %s557 = scalar_lea.sflag [#allocation3], %s556
          %s558 = sand.u32 %s68, 1
          %s559 = scalar_lea.vmem [#allocation2], %s558
          %561 = vsyncadd %s557, 0
          %s562 = scalar_lea.hbm %s1, %s32
          %s564 = sshll.u32 %s562, 4
          %s565 = int_to_ptr.hbm [resolvable:$true] %s564
          %s566 = sshll.u32 %s559, 4
          %s567 = int_to_ptr.vmem [resolvable:$true] %s566
          %569 = dma.hbm_to_vmem [thread:$0]  %s565, 16, %s567, %s557
        $region88: #{tpu_custom_call.1} parent=79 // pred_fallthru
          _
      $region80: #{tpu_custom_call.1} parent=5 // pred_fallthru
        _
      %p570 = scmp.le.s32.totalorder 1, %s32
      %p571 = scmp.lt.s32.totalorder %s32, 3
      %p572 = pnand %p570, %p571
      %p573 = pneg %p572
      // Predicated region
      $region89: #{tpu_custom_call.1} parent=5 // pred_check
        _
      $region90: #{tpu_custom_call.1} parent=5 // pred_check_branch
        %575 = sbr.rel (%p572) target = $region92
      $region91: #{tpu_custom_call.1} parent=5 // pred_region
        %s576 = ssub.s32 %s32, 1
        %s577 = sand.u32 %s71, 1
        %s578 = scalar_lea.sflag [#allocation3], %s577
        %s579 = sand.u32 %s71, 1
        %s580 = scalar_lea.vmem [#allocation2], %s579
        // Predicated region
        $region93: #{tpu_custom_call.1} parent=91 // pred_check
          %p581 = pneg %p84
        $region94: #{tpu_custom_call.1} parent=91 // pred_check_branch
          %583 = sbr.rel (%p581) target = $region96
        $region95: #{tpu_custom_call.1} parent=91 // pred_region
          %585 = dma.done %s578, 16
        $region96: #{tpu_custom_call.1} parent=91 // pred_fallthru
          _
        // Predicated region
        $region97: #{tpu_custom_call.1} parent=91 // pred_check
          %p586 = pneg %p189
        $region98: #{tpu_custom_call.1} parent=91 // pred_check_branch
          %588 = sbr.rel (%p586) target = $region100
        $region99: #{tpu_custom_call.1} parent=91 // pred_region
          %590 = dma.done [#allocation6], 256
        $region100: #{tpu_custom_call.1} parent=91 // pred_fallthru
          _
        // Predicated region
        $region101: #{tpu_custom_call.1} parent=91 // pred_check
          %p591 = pneg %p231
        $region102: #{tpu_custom_call.1} parent=91 // pred_check_branch
          %593 = sbr.rel (%p591) target = $region104
        $region103: #{tpu_custom_call.1} parent=91 // pred_region
          %595 = dma.done [#allocation6], 256
        $region104: #{tpu_custom_call.1} parent=91 // pred_fallthru
          _
        // Predicated region
        $region105: #{tpu_custom_call.1} parent=91 // pred_check
          %p596 = pneg %p315
        $region106: #{tpu_custom_call.1} parent=91 // pred_check_branch
          %598 = sbr.rel (%p596) target = $region108
        $region107: #{tpu_custom_call.1} parent=91 // pred_region
          %600 = dma.done [#allocation9], 256
        $region108: #{tpu_custom_call.1} parent=91 // pred_fallthru
          _
        %p601 = scmp.lt.s32.totalorder %s37, 1
        %s602 = scalar_select %p601, %s37, 1
        %s603 = smul.addr %s602, 8
        %s604 = scalar_lea.vmem %s0, %s603
        %p605 = pneg %p58
        %p606 = pneg %p55
        %s607 = sand.u32 %s71, 1
        %s608 = scalar_lea.sflag [#allocation3], %s607
        %s609 = sand.u32 %s71, 1
        %s610 = scalar_lea.vmem [#allocation2], %s609
        %p611 = pneg %p84
        %p612 = pneg %p81
        %p613 = pneg %p105
        %p614 = pneg %p102
        %p615 = pneg %p126
        %p616 = pneg %p123
        %p617 = pneg %p147
        %p618 = pneg %p144
        %p619 = pneg %p168
        %p620 = pneg %p165
        %p621 = pneg %p189
        %p622 = pneg %p186
        %p623 = pneg %p210
        %p624 = pneg %p207
        %p625 = pneg %p231
        %p626 = pneg %p228
        %p627 = pneg %p252
        %p628 = pneg %p249
        %p629 = pneg %p273
        %p630 = pneg %p270
        %p631 = pneg %p294
        %p632 = pneg %p291
        %p633 = pneg %p315
        %p634 = pneg %p312
        %p635 = pneg %p336
        %p636 = pneg %p333
        %p637 = pneg %p357
        %p638 = pneg %p354
        %p639 = pneg %p378
        %p640 = pneg %p375
        %p641 = pneg %p399
        %p642 = pneg %p396
        %p643 = pneg %p420
        %p644 = pneg %p417
        %p645 = pneg %p446
        %p646 = pneg %p443
        %s647 = sand.u32 %s433, 1
        %s648 = scalar_lea.sflag [#allocation4], %s647
        %s649 = sand.u32 %s433, 1
        %s650 = smul.addr %s649, 8
        %s651 = scalar_lea.vmem [#allocation10], %s650
        %p652 = scmp.lt.s32.totalorder %s37, 1
        %s653 = scalar_select %p652, %s37, 1
        %s654 = smul.addr %s653, 8
        %s655 = scalar_lea.vmem %s0, %s654
        %v657 = vld [vmem:[%s655] sm:$0xff]
        %v658 = vpack.c.bf16 %v657, %v657
        %v659 = vld [vmem:[%s580] sm:$0x1]
        %v660 = vld [vmem:[%s2] sm:$0xf]
        %v661 = vld [vmem:[%s2 + $0x4] sm:$0xf]
        %v662 = vld [vmem:[%s2 + $0x8] sm:$0xf]
        %v663 = vld [vmem:[%s2 + $0xc] sm:$0xf]
        %v664 = vld [vmem:[%s3] sm:$0x1]
        %v666 = vperm.slane %v664, 0
        %v672 = vunpack.c.l.b16 %v660
        %v673 = vunpack.c.l.b16 %v661
        %v674 = vunpack.c.l.b16 %v662
        %v675 = vunpack.c.l.b16 %v663
        %v676 = vpack.c.b16 %v673, %v672
        %v677 = vpack.c.b16 %v675, %v674
        %vm680 = vcmask 261120
        %v682 = vsel %vm680, %v658, 0
        %684 = vmatpush.bf16.msra.mxu0 0
        %685 = vmatpush.bf16.msra.mxu0 0
        %686 = vmatpush.bf16.msra.mxu0 0
        %687 = vmatpush.bf16.msra.mxu0 0
        %688 = vmatpush.bf16.msra.mxu0 0
        %689 = vmatpush.bf16.msra.mxu0 0
        %690 = vmatpush.bf16.msra.mxu0 %v677
        %691 = vmatpush.bf16.msra.mxu0 %v676
        %692 = vmatmul.bf16.gmra.mxu0 %v682
        %v693 = vpop.f32.mrf.mxu0
        %v694 = vadd.f32 %v666, %v693
        %v695 = vpop.f32.mrf.mxu0
        %696 = vdwg.mxu0
        %v697 = vld [vmem:[%s4] sm:$0xf]
        %v698 = vld [vmem:[%s4 + $0x4] sm:$0xf]
        %v699 = vld [vmem:[%s4 + $0x8] sm:$0xf]
        %v700 = vld [vmem:[%s4 + $0xc] sm:$0xf]
        %v701 = vld [vmem:[%s5] sm:$0x1]
        %v703 = vperm.slane %v701, 0
        %v709 = vunpack.c.l.b16 %v697
        %v710 = vunpack.c.l.b16 %v698
        %v711 = vunpack.c.l.b16 %v699
        %v712 = vunpack.c.l.b16 %v700
        %v713 = vpack.c.b16 %v710, %v709
        %v714 = vpack.c.b16 %v712, %v711
        %717 = vmatpush.bf16.msra.mxu0 0
        %718 = vmatpush.bf16.msra.mxu0 0
        %719 = vmatpush.bf16.msra.mxu0 0
        %720 = vmatpush.bf16.msra.mxu0 0
        %721 = vmatpush.bf16.msra.mxu0 0
        %722 = vmatpush.bf16.msra.mxu0 0
        %723 = vmatpush.bf16.msra.mxu0 %v714
        %724 = vmatpush.bf16.msra.mxu0 %v713
        %725 = vmatmul.bf16.gmra.mxu0 %v682
        %v726 = vpop.f32.mrf.mxu0
        %v727 = vadd.f32 %v703, %v726
        %v728 = vpop.f32.mrf.mxu0
        %729 = vdwg.mxu0
        %v730 = vld [vmem:[#allocation5] sm:$0xf]
        %v731 = vld [vmem:[#allocation5 + $0x4] sm:$0xf]
        %v732 = vld [vmem:[#allocation5 + $0x8] sm:$0xf]
        %v733 = vld [vmem:[#allocation5 + $0xc] sm:$0xf]
        %v734 = vld [vmem:[%s7] sm:$0x1]
        %v736 = vperm.slane %v734, 0
        %v742 = vunpack.c.l.b16 %v730
        %v743 = vunpack.c.l.b16 %v731
        %v744 = vunpack.c.l.b16 %v732
        %v745 = vunpack.c.l.b16 %v733
        %v746 = vpack.c.b16 %v743, %v742
        %v747 = vpack.c.b16 %v745, %v744
        %750 = vmatpush.bf16.msra.mxu0 0
        %751 = vmatpush.bf16.msra.mxu0 0
        %752 = vmatpush.bf16.msra.mxu0 0
        %753 = vmatpush.bf16.msra.mxu0 0
        %754 = vmatpush.bf16.msra.mxu0 0
        %755 = vmatpush.bf16.msra.mxu0 0
        %756 = vmatpush.bf16.msra.mxu0 %v747
        %757 = vmatpush.bf16.msra.mxu0 %v746
        %758 = vmatmul.bf16.gmra.mxu0 %v682
        %v759 = vpop.f32.mrf.mxu0
        %v760 = vadd.f32 %v736, %v759
        %v761 = vpop.f32.mrf.mxu0
        %762 = vdwg.mxu0
        %v763 = vmul.f32 %v694, 0.35355338
        %765 = vrot.lane.b32.xlu0 %v763, 120
        %v766 = vpop.permute.xlu0 %765
        %768 = vrot.lane.b32.xlu0 %v763, 112
        %v769 = vpop.permute.xlu0 %768
        %771 = vrot.lane.b32.xlu0 %v763, 104
        %v772 = vpop.permute.xlu0 %771
        %v774 = vrot.slane %v769, 4
        %vm775 = vcmask 1047556
        %v776 = vsel %vm775, %v774, %v763
        %v777 = vrot.slane %v763, 4
        %v778 = vsel %vm775, %v769, %v777
        %v780 = vunpack.c.l.s4 1983009808
        %v781 = vunpack.c.0.s8 %v780
        %v782 = vperm.slane %v776, %v781
        %v784 = vunpack.c.l.s4 1983009808
        %v785 = vunpack.c.0.s8 %v784
        %v786 = vperm.slane %v778, %v785
        %v787 = vrot.slane %v772, 4
        %v788 = vsel %vm775, %v787, %v766
        %v789 = vrot.slane %v766, 4
        %v790 = vsel %vm775, %v772, %v789
        %v792 = vunpack.c.l.s4 1983009808
        %v793 = vunpack.c.0.s8 %v792
        %v794 = vperm.slane %v788, %v793
        %v796 = vunpack.c.l.s4 1983009808
        %v797 = vunpack.c.0.s8 %v796
        %v798 = vperm.slane %v790, %v797
        %v799 = vrot.slane %v794, 4
        %v800 = vsel %vm775, %v799, %v782
        %v801 = vrot.slane %v782, 4
        %v802 = vsel %vm775, %v794, %v801
        %v804 = vunpack.c.l.s4 1934713408
        %v805 = vunpack.c.0.s8 %v804
        %v806 = vperm.slane %v800, %v805
        %v808 = vunpack.c.l.s4 1934713408
        %v809 = vunpack.c.0.s8 %v808
        %v810 = vperm.slane %v802, %v809
        %v811 = vrot.slane %v798, 4
        %v812 = vsel %vm775, %v811, %v786
        %v813 = vrot.slane %v786, 4
        %v814 = vsel %vm775, %v798, %v813
        %v816 = vunpack.c.l.s4 1934713408
        %v817 = vunpack.c.0.s8 %v816
        %v818 = vperm.slane %v812, %v817
        %v820 = vunpack.c.l.s4 1934713408
        %v821 = vunpack.c.0.s8 %v820
        %v822 = vperm.slane %v814, %v821
        %v823 = vrot.slane %v806, 4
        %v824 = vsel %vm775, 0.0, %v823
        %v825 = vrot.slane %v810, 4
        %v826 = vsel %vm775, 0.0, %v825
        %v827 = vrot.slane %v818, 4
        %v828 = vsel %vm775, 0.0, %v827
        %v829 = vrot.slane %v822, 4
        %v830 = vsel %vm775, 0.0, %v829
        %v831 = vsel %vm775, %v825, %v806
        %v833 = vunpack.c.l.s4 1983009808
        %v834 = vunpack.c.0.s8 %v833
        %v835 = vperm.slane %v831, %v834
        %v836 = vrot.slane %v826, 4
        %v837 = vsel %vm775, %v836, %v824
        %v839 = vunpack.c.l.s4 1983009808
        %v840 = vunpack.c.0.s8 %v839
        %v841 = vperm.slane %v837, %v840
        %v842 = vsel %vm775, %v829, %v818
        %v844 = vunpack.c.l.s4 1983009808
        %v845 = vunpack.c.0.s8 %v844
        %v846 = vperm.slane %v842, %v845
        %v847 = vrot.slane %v830, 4
        %v848 = vsel %vm775, %v847, %v828
        %v850 = vunpack.c.l.s4 1983009808
        %v851 = vunpack.c.0.s8 %v850
        %v852 = vperm.slane %v848, %v851
        %v853 = vrot.slane %v841, 4
        %v854 = vsel %vm775, %v853, %v835
        %v855 = vrot.slane %v835, 4
        %v856 = vsel %vm775, %v841, %v855
        %v858 = vunpack.c.l.s4 1934713408
        %v859 = vunpack.c.0.s8 %v858
        %v860 = vperm.slane %v854, %v859
        %v862 = vunpack.c.l.s4 1934713408
        %v863 = vunpack.c.0.s8 %v862
        %v864 = vperm.slane %v856, %v863
        %v865 = vrot.slane %v852, 4
        %v866 = vsel %vm775, %v865, %v846
        %v867 = vrot.slane %v846, 4
        %v868 = vsel %vm775, %v852, %v867
        %v870 = vunpack.c.l.s4 1934713408
        %v871 = vunpack.c.0.s8 %v870
        %v872 = vperm.slane %v866, %v871
        %v874 = vunpack.c.l.s4 1934713408
        %v875 = vunpack.c.0.s8 %v874
        %v876 = vperm.slane %v868, %v875
        %v877 = vrot.slane %v872, 4
        %v878 = vsel %vm775, %v877, %v860
        %v879 = vrot.slane %v860, 4
        %v880 = vsel %vm775, %v872, %v879
        %v881 = vrot.slane %v876, 4
        %v882 = vsel %vm775, %v881, %v864
        %v883 = vrot.slane %v864, 4
        %v884 = vsel %vm775, %v876, %v883
        %886 = vrot.lane.b32.xlu0 %v727, 120
        %v887 = vpop.permute.xlu0 %886
        %889 = vrot.lane.b32.xlu0 %v727, 112
        %v890 = vpop.permute.xlu0 %889
        %892 = vrot.lane.b32.xlu0 %v727, 104
        %v893 = vpop.permute.xlu0 %892
        %v895 = vrot.slane %v890, 4
        %v896 = vsel %vm775, %v895, %v727
        %v897 = vrot.slane %v727, 4
        %v898 = vsel %vm775, %v890, %v897
        %v900 = vunpack.c.l.s4 1983009808
        %v901 = vunpack.c.0.s8 %v900
        %v902 = vperm.slane %v896, %v901
        %v904 = vunpack.c.l.s4 1983009808
        %v905 = vunpack.c.0.s8 %v904
        %v906 = vperm.slane %v898, %v905
        %v907 = vrot.slane %v893, 4
        %v908 = vsel %vm775, %v907, %v887
        %v909 = vrot.slane %v887, 4
        %v910 = vsel %vm775, %v893, %v909
        %v912 = vunpack.c.l.s4 1983009808
        %v913 = vunpack.c.0.s8 %v912
        %v914 = vperm.slane %v908, %v913
        %v916 = vunpack.c.l.s4 1983009808
        %v917 = vunpack.c.0.s8 %v916
        %v918 = vperm.slane %v910, %v917
        %v919 = vrot.slane %v914, 4
        %v920 = vsel %vm775, %v919, %v902
        %v921 = vrot.slane %v902, 4
        %v922 = vsel %vm775, %v914, %v921
        %v924 = vunpack.c.l.s4 1934713408
        %v925 = vunpack.c.0.s8 %v924
        %v926 = vperm.slane %v920, %v925
        %v928 = vunpack.c.l.s4 1934713408
        %v929 = vunpack.c.0.s8 %v928
        %v930 = vperm.slane %v922, %v929
        %v931 = vrot.slane %v918, 4
        %v932 = vsel %vm775, %v931, %v906
        %v933 = vrot.slane %v906, 4
        %v934 = vsel %vm775, %v918, %v933
        %v936 = vunpack.c.l.s4 1934713408
        %v937 = vunpack.c.0.s8 %v936
        %v938 = vperm.slane %v932, %v937
        %v940 = vunpack.c.l.s4 1934713408
        %v941 = vunpack.c.0.s8 %v940
        %v942 = vperm.slane %v934, %v941
        %v943 = vrot.slane %v926, 4
        %v944 = vsel %vm775, 0.0, %v943
        %v945 = vrot.slane %v930, 4
        %v946 = vsel %vm775, 0.0, %v945
        %v947 = vrot.slane %v938, 4
        %v948 = vsel %vm775, 0.0, %v947
        %v949 = vrot.slane %v942, 4
        %v950 = vsel %vm775, 0.0, %v949
        %v951 = vsel %vm775, %v945, %v926
        %v953 = vunpack.c.l.s4 1983009808
        %v954 = vunpack.c.0.s8 %v953
        %v955 = vperm.slane %v951, %v954
        %v956 = vrot.slane %v946, 4
        %v957 = vsel %vm775, %v956, %v944
        %v959 = vunpack.c.l.s4 1983009808
        %v960 = vunpack.c.0.s8 %v959
        %v961 = vperm.slane %v957, %v960
        %v962 = vsel %vm775, %v949, %v938
        %v964 = vunpack.c.l.s4 1983009808
        %v965 = vunpack.c.0.s8 %v964
        %v966 = vperm.slane %v962, %v965
        %v967 = vrot.slane %v950, 4
        %v968 = vsel %vm775, %v967, %v948
        %v970 = vunpack.c.l.s4 1983009808
        %v971 = vunpack.c.0.s8 %v970
        %v972 = vperm.slane %v968, %v971
        %v973 = vrot.slane %v961, 4
        %v974 = vsel %vm775, %v973, %v955
        %v975 = vrot.slane %v955, 4
        %v976 = vsel %vm775, %v961, %v975
        %v978 = vunpack.c.l.s4 1934713408
        %v979 = vunpack.c.0.s8 %v978
        %v980 = vperm.slane %v974, %v979
        %v982 = vunpack.c.l.s4 1934713408
        %v983 = vunpack.c.0.s8 %v982
        %v984 = vperm.slane %v976, %v983
        %v985 = vrot.slane %v972, 4
        %v986 = vsel %vm775, %v985, %v966
        %v987 = vrot.slane %v966, 4
        %v988 = vsel %vm775, %v972, %v987
        %v990 = vunpack.c.l.s4 1934713408
        %v991 = vunpack.c.0.s8 %v990
        %v992 = vperm.slane %v986, %v991
        %v994 = vunpack.c.l.s4 1934713408
        %v995 = vunpack.c.0.s8 %v994
        %v996 = vperm.slane %v988, %v995
        %v997 = vrot.slane %v992, 4
        %v998 = vsel %vm775, %v997, %v980
        %v999 = vrot.slane %v980, 4
        %v1000 = vsel %vm775, %v992, %v999
        %v1001 = vrot.slane %v996, 4
        %v1002 = vsel %vm775, %v1001, %v984
        %v1003 = vrot.slane %v984, 4
        %v1004 = vsel %vm775, %v996, %v1003
        %1006 = vrot.lane.b32.xlu0 %v760, 120
        %v1007 = vpop.permute.xlu0 %1006
        %1009 = vrot.lane.b32.xlu0 %v760, 112
        %v1010 = vpop.permute.xlu0 %1009
        %1012 = vrot.lane.b32.xlu0 %v760, 104
        %v1013 = vpop.permute.xlu0 %1012
        %v1015 = vrot.slane %v1010, 4
        %v1016 = vsel %vm775, %v1015, %v760
        %v1017 = vrot.slane %v760, 4
        %v1018 = vsel %vm775, %v1010, %v1017
        %v1020 = vunpack.c.l.s4 1983009808
        %v1021 = vunpack.c.0.s8 %v1020
        %v1022 = vperm.slane %v1016, %v1021
        %v1024 = vunpack.c.l.s4 1983009808
        %v1025 = vunpack.c.0.s8 %v1024
        %v1026 = vperm.slane %v1018, %v1025
        %v1027 = vrot.slane %v1013, 4
        %v1028 = vsel %vm775, %v1027, %v1007
        %v1029 = vrot.slane %v1007, 4
        %v1030 = vsel %vm775, %v1013, %v1029
        %v1032 = vunpack.c.l.s4 1983009808
        %v1033 = vunpack.c.0.s8 %v1032
        %v1034 = vperm.slane %v1028, %v1033
        %v1036 = vunpack.c.l.s4 1983009808
        %v1037 = vunpack.c.0.s8 %v1036
        %v1038 = vperm.slane %v1030, %v1037
        %v1039 = vrot.slane %v1034, 4
        %v1040 = vsel %vm775, %v1039, %v1022
        %v1041 = vrot.slane %v1022, 4
        %v1042 = vsel %vm775, %v1034, %v1041
        %v1044 = vunpack.c.l.s4 1934713408
        %v1045 = vunpack.c.0.s8 %v1044
        %v1046 = vperm.slane %v1040, %v1045
        %v1048 = vunpack.c.l.s4 1934713408
        %v1049 = vunpack.c.0.s8 %v1048
        %v1050 = vperm.slane %v1042, %v1049
        %v1051 = vrot.slane %v1038, 4
        %v1052 = vsel %vm775, %v1051, %v1026
        %v1053 = vrot.slane %v1026, 4
        %v1054 = vsel %vm775, %v1038, %v1053
        %v1056 = vunpack.c.l.s4 1934713408
        %v1057 = vunpack.c.0.s8 %v1056
        %v1058 = vperm.slane %v1052, %v1057
        %v1060 = vunpack.c.l.s4 1934713408
        %v1061 = vunpack.c.0.s8 %v1060
        %v1062 = vperm.slane %v1054, %v1061
        %v1063 = vrot.slane %v1046, 4
        %v1064 = vsel %vm775, 0.0, %v1063
        %v1065 = vrot.slane %v1050, 4
        %v1066 = vsel %vm775, 0.0, %v1065
        %v1067 = vrot.slane %v1058, 4
        %v1068 = vsel %vm775, 0.0, %v1067
        %v1069 = vrot.slane %v1062, 4
        %v1070 = vsel %vm775, 0.0, %v1069
        %v1071 = vsel %vm775, %v1065, %v1046
        %v1073 = vunpack.c.l.s4 1983009808
        %v1074 = vunpack.c.0.s8 %v1073
        %v1075 = vperm.slane %v1071, %v1074
        %v1076 = vrot.slane %v1066, 4
        %v1077 = vsel %vm775, %v1076, %v1064
        %v1079 = vunpack.c.l.s4 1983009808
        %v1080 = vunpack.c.0.s8 %v1079
        %v1081 = vperm.slane %v1077, %v1080
        %v1082 = vsel %vm775, %v1069, %v1058
        %v1084 = vunpack.c.l.s4 1983009808
        %v1085 = vunpack.c.0.s8 %v1084
        %v1086 = vperm.slane %v1082, %v1085
        %v1087 = vrot.slane %v1070, 4
        %v1088 = vsel %vm775, %v1087, %v1068
        %v1090 = vunpack.c.l.s4 1983009808
        %v1091 = vunpack.c.0.s8 %v1090
        %v1092 = vperm.slane %v1088, %v1091
        %v1093 = vrot.slane %v1081, 4
        %v1094 = vsel %vm775, %v1093, %v1075
        %v1095 = vrot.slane %v1075, 4
        %v1096 = vsel %vm775, %v1081, %v1095
        %v1098 = vunpack.c.l.s4 1934713408
        %v1099 = vunpack.c.0.s8 %v1098
        %v1100 = vperm.slane %v1094, %v1099
        %v1102 = vunpack.c.l.s4 1934713408
        %v1103 = vunpack.c.0.s8 %v1102
        %v1104 = vperm.slane %v1096, %v1103
        %v1105 = vrot.slane %v1092, 4
        %v1106 = vsel %vm775, %v1105, %v1086
        %v1107 = vrot.slane %v1086, 4
        %v1108 = vsel %vm775, %v1092, %v1107
        %v1110 = vunpack.c.l.s4 1934713408
        %v1111 = vunpack.c.0.s8 %v1110
        %v1112 = vperm.slane %v1106, %v1111
        %v1114 = vunpack.c.l.s4 1934713408
        %v1115 = vunpack.c.0.s8 %v1114
        %v1116 = vperm.slane %v1108, %v1115
        %v1117 = vrot.slane %v1112, 4
        %v1118 = vsel %vm775, %v1117, %v1100
        %v1119 = vrot.slane %v1100, 4
        %v1120 = vsel %vm775, %v1112, %v1119
        %v1121 = vrot.slane %v1116, 4
        %v1122 = vsel %vm775, %v1121, %v1104
        %v1123 = vrot.slane %v1104, 4
        %v1124 = vsel %vm775, %v1116, %v1123
        %v1125 = vpack.c.bf16 %v878, %v878
        %v1126 = vpack.c.bf16 %v880, %v880
        %v1127 = vpack.c.bf16 %v882, %v882
        %v1128 = vpack.c.bf16 %v884, %v884
        %v1129 = vpack.c.bf16 %v998, %v998
        %v1130 = vpack.c.bf16 %v1000, %v1000
        %v1131 = vpack.c.bf16 %v1002, %v1002
        %v1132 = vpack.c.bf16 %v1004, %v1004
        %v1134 = vperm.slane %v659, 0
        %vm1136 = vcmask 64512
        %v1138 = vsel %vm1136, %v1125, 0
        %v1141 = vsel %vm1136, %v1129, 0
        %1143 = vmatpush.bf16.xpose.msra.mxu0 0
        %1144 = vmatpush.bf16.xpose.msra.mxu0 0
        %1145 = vmatpush.bf16.xpose.msra.mxu0 0
        %1146 = vmatpush.bf16.xpose.msra.mxu0 0
        %1147 = vmatpush.bf16.xpose.msra.mxu0 0
        %1148 = vmatpush.bf16.xpose.msra.mxu0 0
        %1149 = vmatpush.bf16.xpose.msra.mxu0 0
        %1150 = vmatpush.bf16.xpose.msra.mxu0 %v1141
        %1151 = vmatmul.bf16.gmra.mxu0 %v1138
        %v1152 = vpop.f32.mrf.mxu0
        %v1153 = vadd.f32 %v1134, %v1152
        %v1154 = vpop.f32.mrf.mxu0
        %1155 = vdwg.mxu0
        %v1157 = vsel %vm1136, %v1126, 0
        %v1160 = vsel %vm1136, %v1130, 0
        %1162 = vmatpush.bf16.xpose.msra.mxu0 0
        %1163 = vmatpush.bf16.xpose.msra.mxu0 0
        %1164 = vmatpush.bf16.xpose.msra.mxu0 0
        %1165 = vmatpush.bf16.xpose.msra.mxu0 0
        %1166 = vmatpush.bf16.xpose.msra.mxu0 0
        %1167 = vmatpush.bf16.xpose.msra.mxu0 0
        %1168 = vmatpush.bf16.xpose.msra.mxu0 0
        %1169 = vmatpush.bf16.xpose.msra.mxu0 %v1160
        %1170 = vmatmul.bf16.gmra.mxu0 %v1157
        %v1171 = vpop.f32.mrf.mxu0
        %v1172 = vadd.f32 %v1134, %v1171
        %v1173 = vpop.f32.mrf.mxu0
        %1174 = vdwg.mxu0
        %v1176 = vsel %vm1136, %v1127, 0
        %v1179 = vsel %vm1136, %v1131, 0
        %1181 = vmatpush.bf16.xpose.msra.mxu0 0
        %1182 = vmatpush.bf16.xpose.msra.mxu0 0
        %1183 = vmatpush.bf16.xpose.msra.mxu0 0
        %1184 = vmatpush.bf16.xpose.msra.mxu0 0
        %1185 = vmatpush.bf16.xpose.msra.mxu0 0
        %1186 = vmatpush.bf16.xpose.msra.mxu0 0
        %1187 = vmatpush.bf16.xpose.msra.mxu0 0
        %1188 = vmatpush.bf16.xpose.msra.mxu0 %v1179
        %1189 = vmatmul.bf16.gmra.mxu0 %v1176
        %v1190 = vpop.f32.mrf.mxu0
        %v1191 = vadd.f32 %v1134, %v1190
        %v1192 = vpop.f32.mrf.mxu0
        %1193 = vdwg.mxu0
        %v1195 = vsel %vm1136, %v1128, 0
        %v1198 = vsel %vm1136, %v1132, 0
        %1200 = vmatpush.bf16.xpose.msra.mxu0 0
        %1201 = vmatpush.bf16.xpose.msra.mxu0 0
        %1202 = vmatpush.bf16.xpose.msra.mxu0 0
        %1203 = vmatpush.bf16.xpose.msra.mxu0 0
        %1204 = vmatpush.bf16.xpose.msra.mxu0 0
        %1205 = vmatpush.bf16.xpose.msra.mxu0 0
        %1206 = vmatpush.bf16.xpose.msra.mxu0 0
        %1207 = vmatpush.bf16.xpose.msra.mxu0 %v1198
        %1208 = vmatmul.bf16.gmra.mxu0 %v1195
        %v1209 = vpop.f32.mrf.mxu0
        %v1210 = vadd.f32 %v1134, %v1209
        %v1211 = vpop.f32.mrf.mxu0
        %1212 = vdwg.mxu0
        %v1213 = vsel %vm1136, %v1153, -inf
        %1214 = vmax.xlane.f32.xlu0 %v1213
        %v1215 = vpop.xlane.xlu0 %1214
        %v1216 = vsel %vm1136, %v1172, -inf
        %1217 = vmax.xlane.f32.xlu0 %v1216
        %v1218 = vpop.xlane.xlu0 %1217
        %v1219 = vsel %vm1136, %v1191, -inf
        %1220 = vmax.xlane.f32.xlu0 %v1219
        %v1221 = vpop.xlane.xlu0 %1220
        %v1222 = vsel %vm1136, %v1210, -inf
        %1223 = vmax.xlane.f32.xlu0 %v1222
        %v1224 = vpop.xlane.xlu0 %1223
        %v1225 = vsub.f32 %v1153, %v1215
        %v1226 = vsub.f32 %v1172, %v1218
        %v1227 = vsub.f32 %v1191, %v1221
        %v1228 = vsub.f32 %v1210, %v1224
        %v1229 = vmul.f32 %v1225, 1.442695
        %v1230 = vpow.pop %v1229
        %v1231 = vmul.f32 %v1226, 1.442695
        %v1232 = vpow.pop %v1231
        %v1233 = vmul.f32 %v1227, 1.442695
        %v1234 = vpow.pop %v1233
        %v1235 = vmul.f32 %v1228, 1.442695
        %v1236 = vpow.pop %v1235
        %v1237 = vsel %vm1136, %v1230, 0.0
        %1238 = vadd.xlane.f32.xlu0 %v1237
        %v1239 = vpop.xlane.xlu0 %1238
        %v1240 = vsel %vm1136, %v1232, 0.0
        %1241 = vadd.xlane.f32.xlu0 %v1240
        %v1242 = vpop.xlane.xlu0 %1241
        %v1243 = vsel %vm1136, %v1234, 0.0
        %1244 = vadd.xlane.f32.xlu0 %v1243
        %v1245 = vpop.xlane.xlu0 %1244
        %v1246 = vsel %vm1136, %v1236, 0.0
        %1247 = vadd.xlane.f32.xlu0 %v1246
        %v1248 = vpop.xlane.xlu0 %1247
        %v1249 = vrcp.pop %v1239
        %v1250 = vrcp.pop %v1242
        %v1251 = vrcp.pop %v1245
        %v1252 = vrcp.pop %v1248
        %v1253 = vmul.f32 %v1230, %v1249
        %v1254 = vmul.f32 %v1232, %v1250
        %v1255 = vmul.f32 %v1234, %v1251
        %v1256 = vmul.f32 %v1236, %v1252
        %v1257 = vpack.c.bf16 %v1253, %v1253
        %v1258 = vpack.c.bf16 %v1254, %v1254
        %v1259 = vpack.c.bf16 %v1255, %v1255
        %v1260 = vpack.c.bf16 %v1256, %v1256
        %v1261 = vpack.c.bf16 %v1118, %v1118
        %v1262 = vpack.c.bf16 %v1120, %v1120
        %v1263 = vpack.c.bf16 %v1122, %v1122
        %v1264 = vpack.c.bf16 %v1124, %v1124
        %v1266 = vsel %vm1136, %v1257, 0
        %vm1268 = vcmask 1043456
        %v1270 = vsel %vm1268, %v1261, 0
        %1272 = vmatpush.bf16.msra.mxu0 0
        %1273 = vmatpush.bf16.msra.mxu0 0
        %1274 = vmatpush.bf16.msra.mxu0 0
        %1275 = vmatpush.bf16.msra.mxu0 0
        %1276 = vmatpush.bf16.msra.mxu0 0
        %1277 = vmatpush.bf16.msra.mxu0 0
        %1278 = vmatpush.bf16.msra.mxu0 0
        %1279 = vmatpush.bf16.msra.mxu0 %v1270
        %1280 = vmatmul.bf16.gmra.mxu0 %v1266
        %v1281 = vpop.f32.mrf.mxu0
        %v1282 = vadd.f32 0.0, %v1281
        %v1283 = vpop.f32.mrf.mxu0
        %1284 = vdwg.mxu0
        %v1286 = vsel %vm1136, %v1258, 0
        %v1289 = vsel %vm1268, %v1262, 0
        %1291 = vmatpush.bf16.msra.mxu0 0
        %1292 = vmatpush.bf16.msra.mxu0 0
        %1293 = vmatpush.bf16.msra.mxu0 0
        %1294 = vmatpush.bf16.msra.mxu0 0
        %1295 = vmatpush.bf16.msra.mxu0 0
        %1296 = vmatpush.bf16.msra.mxu0 0
        %1297 = vmatpush.bf16.msra.mxu0 0
        %1298 = vmatpush.bf16.msra.mxu0 %v1289
        %1299 = vmatmul.bf16.gmra.mxu0 %v1286
        %v1300 = vpop.f32.mrf.mxu0
        %v1301 = vadd.f32 0.0, %v1300
        %v1302 = vpop.f32.mrf.mxu0
        %1303 = vdwg.mxu0
        %v1305 = vsel %vm1136, %v1259, 0
        %v1308 = vsel %vm1268, %v1263, 0
        %1310 = vmatpush.bf16.msra.mxu0 0
        %1311 = vmatpush.bf16.msra.mxu0 0
        %1312 = vmatpush.bf16.msra.mxu0 0
        %1313 = vmatpush.bf16.msra.mxu0 0
        %1314 = vmatpush.bf16.msra.mxu0 0
        %1315 = vmatpush.bf16.msra.mxu0 0
        %1316 = vmatpush.bf16.msra.mxu0 0
        %1317 = vmatpush.bf16.msra.mxu0 %v1308
        %1318 = vmatmul.bf16.gmra.mxu0 %v1305
        %v1319 = vpop.f32.mrf.mxu0
        %v1320 = vadd.f32 0.0, %v1319
        %v1321 = vpop.f32.mrf.mxu0
        %1322 = vdwg.mxu0
        %v1324 = vsel %vm1136, %v1260, 0
        %v1327 = vsel %vm1268, %v1264, 0
        %1329 = vmatpush.bf16.msra.mxu0 0
        %1330 = vmatpush.bf16.msra.mxu0 0
        %1331 = vmatpush.bf16.msra.mxu0 0
        %1332 = vmatpush.bf16.msra.mxu0 0
        %1333 = vmatpush.bf16.msra.mxu0 0
        %1334 = vmatpush.bf16.msra.mxu0 0
        %1335 = vmatpush.bf16.msra.mxu0 0
        %1336 = vmatpush.bf16.msra.mxu0 %v1327
        %1337 = vmatmul.bf16.gmra.mxu0 %v1324
        %v1338 = vpop.f32.mrf.mxu0
        %v1339 = vadd.f32 0.0, %v1338
        %v1340 = vpop.f32.mrf.mxu0
        %1341 = vdwg.mxu0
        %v1342 = vrot.slane %v1320, 4
        %v1343 = vsel %vm775, %v1342, %v1282
        %v1344 = vrot.slane %v1282, 4
        %v1345 = vsel %vm775, %v1320, %v1344
        %v1347 = vunpack.c.l.s4 1983009808
        %v1348 = vunpack.c.0.s8 %v1347
        %v1349 = vperm.slane %v1343, %v1348
        %v1351 = vunpack.c.l.s4 1983009808
        %v1352 = vunpack.c.0.s8 %v1351
        %v1353 = vperm.slane %v1345, %v1352
        %v1354 = vrot.slane %v1339, 4
        %v1355 = vsel %vm775, %v1354, %v1301
        %v1356 = vrot.slane %v1301, 4
        %v1357 = vsel %vm775, %v1339, %v1356
        %v1359 = vunpack.c.l.s4 1983009808
        %v1360 = vunpack.c.0.s8 %v1359
        %v1361 = vperm.slane %v1355, %v1360
        %v1363 = vunpack.c.l.s4 1983009808
        %v1364 = vunpack.c.0.s8 %v1363
        %v1365 = vperm.slane %v1357, %v1364
        %v1366 = vrot.slane %v1361, 4
        %v1367 = vsel %vm775, %v1366, %v1349
        %v1368 = vrot.slane %v1349, 4
        %v1369 = vsel %vm775, %v1361, %v1368
        %v1371 = vunpack.c.l.s4 1934713408
        %v1372 = vunpack.c.0.s8 %v1371
        %v1373 = vperm.slane %v1367, %v1372
        %v1375 = vunpack.c.l.s4 1934713408
        %v1376 = vunpack.c.0.s8 %v1375
        %v1377 = vperm.slane %v1369, %v1376
        %v1378 = vrot.slane %v1365, 4
        %v1379 = vsel %vm775, %v1378, %v1353
        %v1380 = vrot.slane %v1353, 4
        %v1381 = vsel %vm775, %v1365, %v1380
        %v1383 = vunpack.c.l.s4 1934713408
        %v1384 = vunpack.c.0.s8 %v1383
        %v1385 = vperm.slane %v1379, %v1384
        %v1387 = vunpack.c.l.s4 1934713408
        %v1388 = vunpack.c.0.s8 %v1387
        %v1389 = vperm.slane %v1381, %v1388
        %v1390 = vrot.slane %v1373, 4
        %v1391 = vsel %vm775, 0.0, %v1390
        %v1392 = vrot.slane %v1377, 4
        %v1393 = vsel %vm775, 0.0, %v1392
        %v1394 = vrot.slane %v1385, 4
        %v1395 = vsel %vm775, 0.0, %v1394
        %v1396 = vrot.slane %v1389, 4
        %v1397 = vsel %vm775, 0.0, %v1396
        %v1398 = vsel %vm775, %v1392, %v1373
        %v1400 = vunpack.c.l.s4 1983009808
        %v1401 = vunpack.c.0.s8 %v1400
        %v1402 = vperm.slane %v1398, %v1401
        %v1403 = vrot.slane %v1393, 4
        %v1404 = vsel %vm775, %v1403, %v1391
        %v1406 = vunpack.c.l.s4 1983009808
        %v1407 = vunpack.c.0.s8 %v1406
        %v1408 = vperm.slane %v1404, %v1407
        %v1409 = vsel %vm775, %v1396, %v1385
        %v1411 = vunpack.c.l.s4 1983009808
        %v1412 = vunpack.c.0.s8 %v1411
        %v1413 = vperm.slane %v1409, %v1412
        %v1414 = vrot.slane %v1397, 4
        %v1415 = vsel %vm775, %v1414, %v1395
        %v1417 = vunpack.c.l.s4 1983009808
        %v1418 = vunpack.c.0.s8 %v1417
        %v1419 = vperm.slane %v1415, %v1418
        %v1420 = vrot.slane %v1408, 4
        %v1421 = vsel %vm775, %v1420, %v1402
        %v1422 = vrot.slane %v1402, 4
        %v1423 = vsel %vm775, %v1408, %v1422
        %v1425 = vunpack.c.l.s4 1934713408
        %v1426 = vunpack.c.0.s8 %v1425
        %v1427 = vperm.slane %v1421, %v1426
        %v1429 = vunpack.c.l.s4 1934713408
        %v1430 = vunpack.c.0.s8 %v1429
        %v1431 = vperm.slane %v1423, %v1430
        %v1432 = vrot.slane %v1419, 4
        %v1433 = vsel %vm775, %v1432, %v1413
        %v1434 = vrot.slane %v1413, 4
        %v1435 = vsel %vm775, %v1419, %v1434
        %v1437 = vunpack.c.l.s4 1934713408
        %v1438 = vunpack.c.0.s8 %v1437
        %v1439 = vperm.slane %v1433, %v1438
        %v1441 = vunpack.c.l.s4 1934713408
        %v1442 = vunpack.c.0.s8 %v1441
        %v1443 = vperm.slane %v1435, %v1442
        %v1444 = vrot.slane %v1439, 4
        %v1445 = vsel %vm775, %v1444, %v1427
        %v1446 = vrot.slane %v1427, 4
        %v1447 = vsel %vm775, %v1439, %v1446
        %v1448 = vrot.slane %v1443, 4
        %v1449 = vsel %vm775, %v1448, %v1431
        %v1450 = vrot.slane %v1431, 4
        %v1451 = vsel %vm775, %v1443, %v1450
        %1453 = vrot.lane.b32.xlu0 %v1447, 8
        %v1454 = vpop.permute.xlu0 %1453
        %1457 = vrot.lane.b32.xlu0 %v1449, 16
        %v1458 = vpop.permute.xlu0 %1457
        %1461 = vrot.lane.b32.xlu0 %v1451, 24
        %v1462 = vpop.permute.xlu0 %1461
        %v1464 = vsel %vm1136, %v1445, %v1454
        %vm1465 = vcmask 130048
        %v1466 = vsel %vm1465, %v1464, %v1458
        %vm1467 = vcmask 195584
        %v1468 = vsel %vm1467, %v1466, %v1462
        %v1469 = vpack.c.bf16 %v1468, %v1468
        %v1470 = vld [vmem:[#allocation7] sm:$0xf]
        %v1471 = vld [vmem:[#allocation7 + $0x4] sm:$0xf]
        %v1472 = vld [vmem:[#allocation7 + $0x8] sm:$0xf]
        %v1473 = vld [vmem:[#allocation7 + $0xc] sm:$0xf]
        %v1474 = vld [vmem:[%s9] sm:$0x1]
        %v1476 = vperm.slane %v1474, 0
        %v1482 = vunpack.c.l.b16 %v1470
        %v1483 = vunpack.c.l.b16 %v1471
        %v1484 = vunpack.c.l.b16 %v1472
        %v1485 = vunpack.c.l.b16 %v1473
        %v1486 = vpack.c.b16 %v1483, %v1482
        %v1487 = vpack.c.b16 %v1485, %v1484
        %v1491 = vsel %vm680, %v1469, 0
        %1493 = vmatpush.bf16.msra.mxu0 0
        %1494 = vmatpush.bf16.msra.mxu0 0
        %1495 = vmatpush.bf16.msra.mxu0 0
        %1496 = vmatpush.bf16.msra.mxu0 0
        %1497 = vmatpush.bf16.msra.mxu0 0
        %1498 = vmatpush.bf16.msra.mxu0 0
        %1499 = vmatpush.bf16.msra.mxu0 %v1487
        %1500 = vmatpush.bf16.msra.mxu0 %v1486
        %1501 = vmatmul.bf16.gmra.mxu0 %v1491
        %v1502 = vpop.f32.mrf.mxu0
        %v1503 = vadd.f32 %v1476, %v1502
        %v1504 = vpop.f32.mrf.mxu0
        %1505 = vdwg.mxu0
        %v1506 = vadd.f32 %v657, %v1503
        %v1507 = vsel %vm680, %v1506, 0.0
        %1508 = vadd.xlane.f32.xlu0 %v1507
        %v1509 = vpop.xlane.xlu0 %1508
        %v1510 = vrcp.pop 32.0
        %v1511 = vmul.f32 32.0, %v1510
        %v1512 = vsub.f32 1.0, %v1511
        %v1513 = vmul.f32 %v1510, %v1512
        %v1514 = vadd.f32 %v1510, %v1513
        %vm1515 = vweird.f32 %v1510
        %v1516 = vsel %vm1515, %v1510, %v1514
        %v1517 = vmul.f32 %v1509, %v1516
        %v1518 = vsub.f32 %v1506, %v1517
        %v1519 = vmul.f32 %v1518, %v1518
        %v1520 = vsel %vm680, %v1519, 0.0
        %1521 = vadd.xlane.f32.xlu0 %v1520
        %v1522 = vpop.xlane.xlu0 %1521
        %v1523 = vmul.f32 %v1522, %v1516
        %v1524 = vadd.f32 %v1523, 1e-05
        %v1525 = vrsqrt.pop %v1524
        %v1526 = vmul.f32 %v1525, %v1524
        %v1527 = vmul.f32 %v1526, %v1525
        %v1528 = vmul.f32 0.5, %v1527
        %v1529 = vsub.f32 1.5, %v1528
        %v1530 = vmul.f32 %v1525, %v1529
        %vm1531 = vweird.f32 %v1524
        %vm1532 = vweird.f32 %v1525
        %vm1533 = vmor %vm1531, %vm1532
        %v1534 = vsel %vm1533, %v1525, %v1530
        %v1535 = vmul.f32 %v1518, %v1534
        %v1536 = vld [vmem:[%s10] sm:$0x1]
        %v1538 = vperm.slane %v1536, 0
        %v1540 = vmul.f32 %v1535, %v1538
        %v1541 = vld [vmem:[%s11] sm:$0x1]
        %v1543 = vperm.slane %v1541, 0
        %v1545 = vadd.f32 %v1540, %v1543
        %v1546 = vpack.c.bf16 %v1545, %v1545
        %v1547 = vld [vmem:[#allocation8] sm:$0xf]
        %v1548 = vld [vmem:[#allocation8 + $0x4] sm:$0xf]
        %v1549 = vld [vmem:[#allocation8 + $0x8] sm:$0xf]
        %v1550 = vld [vmem:[#allocation8 + $0xc] sm:$0xf]
        %v1551 = vld [vmem:[%s13] sm:$0x1]
        %v1553 = vperm.slane %v1551, 0
        %v1559 = vunpack.c.l.b16 %v1547
        %v1560 = vunpack.c.l.b16 %v1548
        %v1561 = vunpack.c.l.b16 %v1549
        %v1562 = vunpack.c.l.b16 %v1550
        %v1563 = vpack.c.b16 %v1560, %v1559
        %v1564 = vpack.c.b16 %v1562, %v1561
        %v1568 = vsel %vm680, %v1546, 0
        %1570 = vmatpush.bf16.msra.mxu0 0
        %1571 = vmatpush.bf16.msra.mxu0 0
        %1572 = vmatpush.bf16.msra.mxu0 0
        %1573 = vmatpush.bf16.msra.mxu0 0
        %1574 = vmatpush.bf16.msra.mxu0 0
        %1575 = vmatpush.bf16.msra.mxu0 0
        %1576 = vmatpush.bf16.msra.mxu0 %v1564
        %1577 = vmatpush.bf16.msra.mxu0 %v1563
        %1578 = vmatmul.bf16.gmra.mxu0 %v1568
        %v1579 = vpop.f32.mrf.mxu0
        %v1580 = vadd.f32 %v1553, %v1579
        %v1581 = vpop.f32.mrf.mxu0
        %1582 = vdwg.mxu0
        %v1583 = vmax.f32 %v1580, 0.0
        %v1584 = vpack.c.bf16 %v1583, %v1583
        %v1585 = vld [vmem:[%s14] sm:$0xf]
        %v1586 = vld [vmem:[%s14 + $0x4] sm:$0xf]
        %v1587 = vld [vmem:[%s14 + $0x8] sm:$0xf]
        %v1588 = vld [vmem:[%s14 + $0xc] sm:$0xf]
        %v1589 = vld [vmem:[%s14 + $0x10] sm:$0xf]
        %v1590 = vld [vmem:[%s14 + $0x14] sm:$0xf]
        %v1591 = vld [vmem:[%s14 + $0x18] sm:$0xf]
        %v1592 = vld [vmem:[%s14 + $0x1c] sm:$0xf]
        %v1593 = vld [vmem:[%s15] sm:$0x1]
        %v1595 = vperm.slane %v1593, 0
        %v1605 = vunpack.c.l.b16 %v1585
        %v1606 = vunpack.c.l.b16 %v1586
        %v1607 = vunpack.c.l.b16 %v1587
        %v1608 = vunpack.c.l.b16 %v1588
        %v1609 = vunpack.c.l.b16 %v1589
        %v1610 = vunpack.c.l.b16 %v1590
        %v1611 = vunpack.c.l.b16 %v1591
        %v1612 = vunpack.c.l.b16 %v1592
        %v1613 = vpack.c.b16 %v1606, %v1605
        %v1614 = vpack.c.b16 %v1608, %v1607
        %v1615 = vpack.c.b16 %v1610, %v1609
        %v1616 = vpack.c.b16 %v1612, %v1611
        %vm1621 = vcmask 523264
        %v1623 = vsel %vm1621, %v1584, 0
        %1625 = vmatpush.bf16.msra.mxu0 0
        %1626 = vmatpush.bf16.msra.mxu0 0
        %1627 = vmatpush.bf16.msra.mxu0 0
        %1628 = vmatpush.bf16.msra.mxu0 0
        %1629 = vmatpush.bf16.msra.mxu0 %v1616
        %1630 = vmatpush.bf16.msra.mxu0 %v1615
        %1631 = vmatpush.bf16.msra.mxu0 %v1614
        %1632 = vmatpush.bf16.msra.mxu0 %v1613
        %1633 = vmatmul.bf16.gmra.mxu0 %v1623
        %v1634 = vpop.f32.mrf.mxu0
        %v1635 = vadd.f32 %v1595, %v1634
        %v1636 = vpop.f32.mrf.mxu0
        %1637 = vdwg.mxu0
        %v1638 = vadd.f32 %v1545, %v1635
        %v1639 = vsel %vm680, %v1638, 0.0
        %1640 = vadd.xlane.f32.xlu0 %v1639
        %v1641 = vpop.xlane.xlu0 %1640
        %v1642 = vmul.f32 %v1641, %v1516
        %v1643 = vsub.f32 %v1638, %v1642
        %v1644 = vmul.f32 %v1643, %v1643
        %v1645 = vsel %vm680, %v1644, 0.0
        %1646 = vadd.xlane.f32.xlu0 %v1645
        %v1647 = vpop.xlane.xlu0 %1646
        %v1648 = vmul.f32 %v1647, %v1516
        %v1649 = vadd.f32 %v1648, 1e-05
        %v1650 = vrsqrt.pop %v1649
        %v1651 = vmul.f32 %v1650, %v1649
        %v1652 = vmul.f32 %v1651, %v1650
        %v1653 = vmul.f32 0.5, %v1652
        %v1654 = vsub.f32 1.5, %v1653
        %v1655 = vmul.f32 %v1650, %v1654
        %vm1656 = vweird.f32 %v1649
        %vm1657 = vweird.f32 %v1650
        %vm1658 = vmor %vm1656, %vm1657
        %v1659 = vsel %vm1658, %v1650, %v1655
        %v1660 = vmul.f32 %v1643, %v1659
        %v1661 = vld [vmem:[%s16] sm:$0x1]
        %v1663 = vperm.slane %v1661, 0
        %v1665 = vmul.f32 %v1660, %v1663
        %v1666 = vld [vmem:[%s17] sm:$0x1]
        %v1668 = vperm.slane %v1666, 0
        %v1670 = vadd.f32 %v1665, %v1668
        %1671 = vst.msk [vmem:[%s651] sm:$0xff] %vm680, %v1670
        %s1672 = sand.u32 %s433, 1
        %s1673 = scalar_lea.sflag [#allocation4], %s1672
        %s1674 = sand.u32 %s433, 1
        %s1675 = smul.addr %s1674, 8
        %s1676 = scalar_lea.vmem [#allocation10], %s1675
        // Predicated region
        $region109: #{tpu_custom_call.1} parent=91 // pred_check
          %p1677 = pneg %p443
        $region110: #{tpu_custom_call.1} parent=91 // pred_check_branch
          %1679 = sbr.rel (%p1677) target = $region112
        $region111: #{tpu_custom_call.1} parent=91 // pred_region
          %1681 = vsyncadd %s1673, 0
          %s1682 = smul.addr %s37, 8
          %s1683 = scalar_lea.hbm %s18, %s1682
          %s1685 = sshll.u32 %s1676, 4
          %s1686 = int_to_ptr.vmem [resolvable:$true] %s1685
          %s1687 = sshll.u32 %s1683, 4
          %s1688 = int_to_ptr.hbm [resolvable:$true] %s1687
          %1690 = dma.vmem_to_hbm [thread:$0]  %s1686, 128, %s1688, %s1673
        $region112: #{tpu_custom_call.1} parent=91 // pred_fallthru
          _
      $region92: #{tpu_custom_call.1} parent=5 // pred_fallthru
        _
      %p1691 = scmp.le.s32.totalorder 2, %s32
      // Predicated region
      $region113: #{tpu_custom_call.1} parent=5 // pred_check
        %p1692 = pneg %p1691
      $region114: #{tpu_custom_call.1} parent=5 // pred_check_branch
        %1694 = sbr.rel (%p1692) target = $region116
      $region115: #{tpu_custom_call.1} parent=5 // pred_region
        %s1695 = ssub.s32 %s32, 2
        // Predicated region
        $region117: #{tpu_custom_call.1} parent=115 // pred_check
          %p1696 = pneg %p449
        $region118: #{tpu_custom_call.1} parent=115 // pred_check_branch
          %1698 = sbr.rel (%p1696) target = $region120
        $region119: #{tpu_custom_call.1} parent=115 // pred_region
          %s1699 = sand.u32 %s434, 1
          %s1700 = scalar_lea.sflag [#allocation4], %s1699
          %s1701 = sand.u32 %s434, 1
          %s1702 = smul.addr %s1701, 8
          %s1703 = scalar_lea.vmem [#allocation10], %s1702
          %1705 = dma.done %s1700, 128
        $region120: #{tpu_custom_call.1} parent=115 // pred_fallthru
          _
      $region116: #{tpu_custom_call.1} parent=5 // pred_fallthru
        _
    $region6: #{tpu_custom_call.1} parent=1 // loop_footer
      %s36 = sadd.s32 1, %s32
    $region7: #{tpu_custom_call.1} parent=1 // loop_footer_branch
      %31 = sbr.rel target = $region3
    $region8: #{tpu_custom_call.1} parent=1 // loop_exit
      _
    %1706 = vsyncpa [#allocation3], 1
    %s1707 = scalar_lea.sflag [#allocation3], 1
    %1708 = vsyncpa %s1707, 1
    %1709 = vsyncpa [#allocation6], 1
    %1710 = vsyncpa [#allocation9], 1
    %1711 = vsyncpa [#allocation4], 1
    %s1712 = scalar_lea.sflag [#allocation4], 1
    %1713 = vsyncpa %s1712, 1

</llo_original>
